<compile_context>
chip_gen: v5e
topology: v5e:2x2
jax: 0.10.0
libtpu: 0.0.40
codegen_flags: <defaults>
</compile_context>

<pallas_src>
import math

import jax
import jax.numpy as jnp
import numpy as np
from jax.experimental import pallas as pl
from jax.experimental.pallas import tpu as pltpu


def _erf_f32(x):
    # Abramowitz & Stegun 7.1.26 rational approximation (max abs err ~1.5e-7).
    # The divide goes through the EUP approx-reciprocal (free next to the exp).
    a1, a2, a3, a4, a5 = 0.254829592, -0.284496736, 1.421413741, -1.453152027, 1.061405429
    p = 0.3275911
    ax = jnp.abs(x)
    t = pl.reciprocal(1.0 + p * ax, approx=True)
    poly = ((((a5 * t + a4) * t + a3) * t + a2) * t + a1) * t
    y = 1.0 - poly * jnp.exp(-ax * ax)
    return jnp.where(x >= 0, y, -y)


def _gelu_exact(x):
    # torch.nn.GELU default (approximate='none'): x * 0.5 * (1 + erf(x / sqrt(2)))
    return 0.5 * x * (1.0 + _erf_f32(x * (1.0 / math.sqrt(2.0))))


def _make_kernel(*, tn, n_tiles, w2_resident):
    """Build the fused kernel.

    Grid = (m_tiles, n_tiles); m is "parallel" (megacore-shardable), n is the
    innermost, sequential ("arbitrary") axis.  CORRECTNESS NOTE: the y_ref cache
    written at n == 0 is read by that same row tile's n > 0 steps, so the n axis
    MUST remain innermost and sequential.
    """
    slab = tn

    def kernel(p_ref, wc_ref, w1_ref, b1_ref, w2_ref, b2_ref, o_ref, y_ref):
        n = pl.program_id(1)

        # ---- heavy step: once per row tile -------------------------------
        @pl.when(n == 0)
        def _():
            # Conv-as-matmul: (tm, 9*Cin) x (9*Cin, 1024), f32 accumulation.
            h = jnp.dot(p_ref[...], wc_ref[...],
                        preferred_element_type=jnp.float32).astype(jnp.bfloat16)
            # Linear1 + exact GELU in `slab`-wide column slabs, written straight
            # into the bf16 y cache (no (tm, dout) f32 intermediate; slab j+1's
            # MXU matmul overlaps slab j's VPU/EUP GELU).
            for j in range(n_tiles):
                lo, hi = j * slab, (j + 1) * slab
                y = jnp.dot(h, w1_ref[:, lo:hi],
                            preferred_element_type=jnp.float32) + b1_ref[:, lo:hi]
                y_ref[:, lo:hi] = _gelu_exact(y).astype(y_ref.dtype)

        # ---- every (m, n) step: (tm, dout) x (dout, tn) + bias ------------
        if w2_resident:
            if n_tiles == 1:
                w2_blk = w2_ref[...]
                b2_blk = b2_ref[...]
            else:
                ns = pl.multiple_of(n * tn, tn)
                w2_blk = w2_ref[:, pl.ds(ns, tn)]
                b2_blk = b2_ref[:, pl.ds(ns, tn)]
        else:
            w2_blk = w2_ref[...]
            b2_blk = b2_ref[...]

        o = jnp.dot(y_ref[...], w2_blk, preferred_element_type=jnp.float32) + b2_blk
        o_ref[...] = o.astype(o_ref.dtype)

    return kernel


def _im2col_nhwc_stride2_pad1(x_bhwc):
    """(B, H, W, C) -> patches (B*Ho*Wo, 9*C) with (ky, kx, c) feature order.

    Matches a 3x3 / stride-2 / pad-1 conv; channels stay lane-major (no NCHW
    transpose).  Pure slicing/concat, so doing it in bf16 is exact.
    """
    B, H, W, C = x_bhwc.shape
    Ho = (H + 2 - 3) // 2 + 1
    Wo = (W + 2 - 3) // 2 + 1
    xpad = jnp.pad(x_bhwc, ((0, 0), (1, 1), (1, 1), (0, 0)))
    cols = []
    for ky in range(3):
        for kx in range(3):
            cols.append(xpad[:, ky::2, kx::2, :][:, :Ho, :Wo, :])
    patches = jnp.concatenate(cols, axis=-1)                  # (B, Ho, Wo, 9*C)
    return patches.reshape(B * Ho * Wo, 9 * C), Ho, Wo


def cabstractor_forward(x, params, *, tm_target=None, tn_target=512,
                        w2_resident_override=None):
    """x: (B, L, D_enc), L = hw*hw. params: dict of weights in torch layouts."""
    out_dtype = x.dtype
    B, L, D = x.shape
    hw = int(math.isqrt(L))
    assert hw * hw == L, "sequence length must be a perfect square"

    # NHWC im2col straight from the (B, L, D) layout, already in bf16.
    # TODO(synk): fold the 3x3/stride-2 im2col into the kernel itself (9
    # accumulated strided (tm, Cin) x (Cin, 1024) matmuls via manual DMA) to
    # avoid materializing this 9x-expanded patches array in HBM.
    x_bhwc = x.reshape(B, hw, hw, D).astype(jnp.bfloat16)
    patches, Ho, Wo = _im2col_nhwc_stride2_pad1(x_bhwc)       # (M, 9*D) bf16

    hidden = params["w_conv"].shape[0]                        # 1024
    dout = params["w1"].shape[0]
    K1 = 9 * D
    M = B * Ho * Wo

    # Torch-layout weights -> bf16 matmul operands (MXU runs bf16 at full rate).
    # Conv weight (Cout, Cin, 3, 3) -> rows ordered (ky, kx, c) to match patches.
    wc = params["w_conv"].transpose(2, 3, 1, 0).reshape(K1, hidden).astype(jnp.bfloat16)
    w1 = params["w1"].T.astype(jnp.bfloat16)                  # (hidden, dout)
    b1 = params["b1"].reshape(1, dout).astype(jnp.float32)
    w2 = params["w2"].T.astype(jnp.bfloat16)                  # (dout, dout)
    b2 = params["b2"].reshape(1, dout).astype(jnp.float32)

    # ---- physical VMEM budget (v5e/v6e: 128 MiB, v7x: 64 MiB per TC) ---------
    try:
        vmem_cap = int(pltpu.get_tpu_info().vmem_capacity_bytes)
    except Exception:
        vmem_cap = 64 << 20                                    # conservative default
    budget = int(0.85 * vmem_cap)
    out_isz = jnp.dtype(out_dtype).itemsize

    # ---- tile selection ------------------------------------------------------
    # tn: lane-aligned divisor of dout (no partial n tiles -> clean static slabs).
    if dout > tn_target and dout % 128 == 0:
        cands = [t for t in range(128, max(tn_target, 128) + 1, 128) if dout % t == 0]
        tn = max(cands) if cands else dout
    else:
        tn = dout
    n_tiles = dout // tn

    # Deeper prefetch on the patches stream when there are cheap n steps to hide
    # the big (tm, 9D) DMA behind.
    patch_bufs = 3 if n_tiles >= 3 else 2

    # tm: prefer >= 256 for w2-step arithmetic intensity; 512 on 128 MiB parts.
    if tm_target is None:
        tm_target = 512 if vmem_cap >= (100 << 20) else 256
    if M >= 16:
        # Cap so the "parallel" m axis has >= 2 tiles (keeps both v7x TCs busy).
        tm_cap = -(-((M + 1) // 2) // 8) * 8
    else:
        tm_cap = M
    tm_cands = sorted({min(c, tm_cap) for c in (tm_target, 256, 128, 64, 32, 16, 8)},
                      reverse=True)

    def _need(tm_c, resident_w2):
        streamed = (patch_bufs * tm_c * K1 * 2                 # patches (bf16)
                    + 2 * tm_c * tn * out_isz)                 # out blocks
        if resident_w2:
            w2_b = dout * dout * 2 + dout * 4                  # w2 + b2 resident
        else:
            w2_b = 2 * dout * tn * 2 + 2 * tn * 4              # streamed w2/b2 blocks
        resident = K1 * hidden * 2 + hidden * dout * 2 + dout * 4   # wc, w1, b1
        scratch = tm_c * dout * 2                              # bf16 y cache
        interm = tm_c * hidden * 4 + 2 * tm_c * tn * 4         # f32 conv/linear outs
        return streamed + w2_b + resident + scratch + interm

    chosen = None
    for tm_c in tm_cands:
        opts = [True, False] if w2_resident_override is None else [bool(w2_resident_override)]
        for r in opts:
            if _need(tm_c, r) + (4 << 20) <= budget:
                chosen = (tm_c, r)
                break
        if chosen is not None:
            break
    if chosen is None:                                          # best effort
        chosen = (tm_cands[-1], w2_resident_override is True)
    tm, w2_resident = chosen

    vmem_limit = int(min(_need(tm, w2_resident) + (8 << 20), budget))
    grid = (pl.cdiv(M, tm), n_tiles)

    # Grid-invariant operands: whole array resident in VMEM, single copy.
    resident_spec = pl.BlockSpec(memory_space=pltpu.MemorySpace.VMEM)

    patches_map = lambda i, n: (i, 0)
    if patch_bufs > 2 and hasattr(pl, "Buffered"):
        try:
            patches_spec = pl.BlockSpec((tm, K1), patches_map,
                                        pipeline_mode=pl.Buffered(patch_bufs))
        except TypeError:
            patches_spec = pl.BlockSpec((tm, K1), patches_map)
    else:
        patches_spec = pl.BlockSpec((tm, K1), patches_map)

    if w2_resident:
        w2_spec = resident_spec
        b2_spec = resident_spec
    else:
        w2_spec = pl.BlockSpec((dout, tn), lambda i, n: (0, n))
        b2_spec = pl.BlockSpec((1, tn), lambda i, n: (0, n))

    cost = pl.CostEstimate(
        flops=2 * M * (K1 * hidden + hidden * dout + dout * dout),
        transcendentals=M * dout,
        bytes_accessed=(M * K1 * 2 + K1 * hidden * 2 + hidden * dout * 2
                        + dout * dout * 2 + 2 * dout * 4 + M * dout * out_isz))

    kernel = _make_kernel(tn=tn, n_tiles=n_tiles, w2_resident=w2_resident)

    out = pl.pallas_call(
        kernel,
        out_shape=jax.ShapeDtypeStruct((M, dout), out_dtype),
        grid_spec=pltpu.PrefetchScalarGridSpec(
            num_scalar_prefetch=0,
            grid=grid,
            in_specs=[patches_spec,      # patches: stream over m
                      resident_spec,     # wc
                      resident_spec,     # w1
                      resident_spec,     # b1
                      w2_spec,           # w2: resident or streamed over n
                      b2_spec],          # b2
            out_specs=pl.BlockSpec((tm, tn), lambda i, n: (i, n)),
            scratch_shapes=[pltpu.VMEM((tm, dout), jnp.bfloat16)],  # GELU(Linear1) cache
        ),
        compiler_params=pltpu.CompilerParams(
            # n MUST stay innermost + "arbitrary": n>0 steps read the y scratch
            # written by this row tile's n==0 step.
            dimension_semantics=("parallel", "arbitrary"),
            vmem_limit_bytes=vmem_limit,
        ),
        cost_estimate=cost,
    )(patches, wc, w1, b1, w2, b2)

    return out.reshape(B, Ho * Wo, dout)


def _reference_forward(x, params):
    """Plain-JAX f32 reference (mirrors the PyTorch forward)."""
    dtype = x.dtype
    xf = x.astype(jnp.float32)
    B, L, D = x.shape
    hw = int(math.isqrt(L))
    x_nchw = xf.reshape(B, hw, hw, D).transpose(0, 3, 1, 2)
    y = jax.lax.conv_general_dilated(
        x_nchw, params["w_conv"].astype(jnp.float32),
        window_strides=(2, 2), padding=((1, 1), (1, 1)),
        dimension_numbers=("NCHW", "OIHW", "NCHW"))
    Bo, Co, Ho, Wo = y.shape
    y = y.transpose(0, 2, 3, 1).reshape(B, Ho * Wo, Co)
    y = y @ params["w1"].T.astype(jnp.float32) + params["b1"].astype(jnp.float32)
    y = jax.nn.gelu(y, approximate=False)
    y = y @ params["w2"].T.astype(jnp.float32) + params["b2"].astype(jnp.float32)
    return y.astype(dtype)


def init_params(key, encoder_hidden_size, output_hidden_size, hidden_size=1024):
    k1, k2, k3, k4, k5 = jax.random.split(key, 5)
    return {
        # torch layouts: Conv2d weight (Cout, Cin, kH, kW); Linear weight (out, in)
        "w_conv": jax.random.normal(k1, (hidden_size, encoder_hidden_size, 3, 3), jnp.float32) * 0.05,
        "w1": jax.random.normal(k2, (output_hidden_size, hidden_size), jnp.float32) * 0.02,
        "b1": jax.random.normal(k3, (output_hidden_size,), jnp.float32) * 0.01,
        "w2": jax.random.normal(k4, (output_hidden_size, output_hidden_size), jnp.float32) * 0.05,
        "b2": jax.random.normal(k5, (output_hidden_size,), jnp.float32) * 0.01,
    }


if __name__ == "__main__":
    B, hw, D_enc = 2, 8, 32                       # x: (2, 64, 32); conv 4x4 -> 16 tokens
    key = jax.random.PRNGKey(0)
    kx, kp1, kp2, kp3 = jax.random.split(key, 4)
    x = jax.random.normal(kx, (B, hw * hw, D_enc), jnp.float32)

    # 1) dout=128: single n tile, resident w2, static in-kernel slices.
    p1 = init_params(kp1, D_enc, 128)
    out1 = jax.block_until_ready(cabstractor_forward(x, p1))
    assert out1.shape == (B, (hw // 2) ** 2, 128) and out1.dtype == x.dtype
    np.testing.assert_allclose(np.asarray(out1),
                               np.asarray(_reference_forward(x, p1)),
                               rtol=5e-2, atol=5e-2)

    # 2) dout=256, tn=128, streamed w2: exercises the y cache across n steps,
    #    the slabbed Linear1+GELU and the streamed-w2 code path.
    p2 = init_params(kp2, D_enc, 256)
    out2 = jax.block_until_ready(
        cabstractor_forward(x, p2, tn_target=128, w2_resident_override=False))
    assert out2.shape == (B, (hw // 2) ** 2, 256) and out2.dtype == x.dtype
    np.testing.assert_allclose(np.asarray(out2),
                               np.asarray(_reference_forward(x, p2)),
                               rtol=5e-2, atol=5e-2)

    # 3) dout=384, tn=128 (3 n tiles): exercises resident-w2 dynamic slicing and
    #    the Buffered(3) patches pipeline.
    p3 = init_params(kp3, D_enc, 384)
    out3 = jax.block_until_ready(cabstractor_forward(x, p3, tn_target=128))
    assert out3.shape == (B, (hw // 2) ** 2, 384) and out3.dtype == x.dtype
    np.testing.assert_allclose(np.asarray(out3),
                               np.asarray(_reference_forward(x, p3)),
                               rtol=5e-2, atol=5e-2)

    print("KERNEL_OK")
</pallas_src>

<mosaic_0001>
module attributes {stable_mosaic.version = 11 : i64} {
  func.func @kernel(%arg0: i32, %arg1: i32, %arg2: memref<16x288xbf16, #tpu.memory_space<vmem>>, %arg3: memref<288x1024xbf16, #tpu.memory_space<vmem>>, %arg4: memref<1024x128xbf16, #tpu.memory_space<vmem>>, %arg5: memref<1x128xf32, #tpu.memory_space<vmem>>, %arg6: memref<128x128xbf16, #tpu.memory_space<vmem>>, %arg7: memref<1x128xf32, #tpu.memory_space<vmem>>, %arg8: memref<16x128xf32, #tpu.memory_space<vmem>>, %arg9: memref<16x128xbf16, #tpu.memory_space<vmem>>) attributes {dimension_semantics = [#tpu.dimension_semantics<parallel>, #tpu.dimension_semantics<arbitrary>], iteration_bounds = array<i64: 2, 1>, scalar_prefetch = 0 : i64, scratch_operands = 1 : i64, tpu.core_type = #tpu.core_type<tc>, window_params = [{transform_indices = @transform_0, window_bounds = array<i64: 16, 288>}, {pipeline_mode = #tpu.pipeline_mode<synchronous>, transform_indices = @transform_1, window_bounds = array<i64: 288, 1024>}, {pipeline_mode = #tpu.pipeline_mode<synchronous>, transform_indices = @transform_2, window_bounds = array<i64: 1024, 128>}, {pipeline_mode = #tpu.pipeline_mode<synchronous>, transform_indices = @transform_3, window_bounds = array<i64: 1, 128>}, {pipeline_mode = #tpu.pipeline_mode<synchronous>, transform_indices = @transform_4, window_bounds = array<i64: 128, 128>}, {pipeline_mode = #tpu.pipeline_mode<synchronous>, transform_indices = @transform_5, window_bounds = array<i64: 1, 128>}, {transform_indices = @transform_6, window_bounds = array<i64: 16, 128>}]} {
    %c0_i32 = arith.constant 0 : i32
    %0 = arith.cmpi eq, %arg1, %c0_i32 : i32
    %1 = arith.extui %0 : i1 to i32
    %c0_i32_0 = arith.constant 0 : i32
    %2 = arith.cmpi ne, %1, %c0_i32_0 : i32
    scf.if %2 {
      %c0_8 = arith.constant 0 : index
      %c0_9 = arith.constant 0 : index
      %10 = vector.load %arg2[%c0_8, %c0_9] : memref<16x288xbf16, #tpu.memory_space<vmem>>, vector<16x288xbf16>
      %c0_10 = arith.constant 0 : index
      %c0_11 = arith.constant 0 : index
      %11 = vector.load %arg3[%c0_10, %c0_11] : memref<288x1024xbf16, #tpu.memory_space<vmem>>, vector<288x1024xbf16>
      %cst_12 = arith.constant dense<0.000000e+00> : vector<16x1024xf32>
      %12 = tpu.matmul %10, %11, %cst_12 {dimension_numbers = #tpu.dot_dimension_numbers<[1], [0], [0], [1], [0, 0, 1, 1], [], []>} : vector<16x288xbf16>, vector<288x1024xbf16>, vector<16x1024xf32> -> vector<16x1024xf32>
      %13 = arith.truncf %12 : vector<16x1024xf32> to vector<16x1024xbf16>
      %c0_13 = arith.constant 0 : index
      %c0_14 = arith.constant 0 : index
      %14 = vector.load %arg4[%c0_13, %c0_14] : memref<1024x128xbf16, #tpu.memory_space<vmem>>, vector<1024x128xbf16>
      %cst_15 = arith.constant dense<0.000000e+00> : vector<16x128xf32>
      %15 = tpu.matmul %13, %14, %cst_15 {dimension_numbers = #tpu.dot_dimension_numbers<[1], [0], [0], [1], [0, 0, 1, 1], [], []>} : vector<16x1024xbf16>, vector<1024x128xbf16>, vector<16x128xf32> -> vector<16x128xf32>
      %c0_16 = arith.constant 0 : index
      %c0_17 = arith.constant 0 : index
      %16 = vector.load %arg5[%c0_16, %c0_17] : memref<1x128xf32, #tpu.memory_space<vmem>>, vector<1x128xf32>
      %17 = vector.broadcast %16 : vector<1x128xf32> to vector<16x128xf32>
      %18 = arith.addf %15, %17 : vector<16x128xf32>
      %cst_18 = arith.constant 5.000000e-01 : f32
      %19 = vector.broadcast %cst_18 : f32 to vector<16x128xf32>
      %20 = arith.mulf %19, %18 : vector<16x128xf32>
      %cst_19 = arith.constant 0.707106769 : f32
      %21 = vector.broadcast %cst_19 : f32 to vector<16x128xf32>
      %22 = arith.mulf %18, %21 : vector<16x128xf32>
      %23 = math.absf %22 : vector<16x128xf32>
      %cst_20 = arith.constant 0.327591091 : f32
      %24 = vector.broadcast %cst_20 : f32 to vector<16x128xf32>
      %25 = arith.mulf %24, %23 : vector<16x128xf32>
      %cst_21 = arith.constant 1.000000e+00 : f32
      %26 = vector.broadcast %cst_21 : f32 to vector<16x128xf32>
      %27 = arith.addf %26, %25 : vector<16x128xf32>
      %28 = tpu.reciprocal %27 {approx = true} : vector<16x128xf32> -> vector<16x128xf32>
      %cst_22 = arith.constant 1.06140542 : f32
      %29 = vector.broadcast %cst_22 : f32 to vector<16x128xf32>
      %30 = arith.mulf %29, %28 : vector<16x128xf32>
      %cst_23 = arith.constant -1.45315206 : f32
      %31 = vector.broadcast %cst_23 : f32 to vector<16x128xf32>
      %32 = arith.addf %30, %31 : vector<16x128xf32>
      %33 = arith.mulf %32, %28 : vector<16x128xf32>
      %cst_24 = arith.constant 1.42141378 : f32
      %34 = vector.broadcast %cst_24 : f32 to vector<16x128xf32>
      %35 = arith.addf %33, %34 : vector<16x128xf32>
      %36 = arith.mulf %35, %28 : vector<16x128xf32>
      %cst_25 = arith.constant -0.284496725 : f32
      %37 = vector.broadcast %cst_25 : f32 to vector<16x128xf32>
      %38 = arith.addf %36, %37 : vector<16x128xf32>
      %39 = arith.mulf %38, %28 : vector<16x128xf32>
      %cst_26 = arith.constant 0.254829586 : f32
      %40 = vector.broadcast %cst_26 : f32 to vector<16x128xf32>
      %41 = arith.addf %39, %40 : vector<16x128xf32>
      %42 = arith.mulf %41, %28 : vector<16x128xf32>
      %cst_27 = arith.constant 0.000000e+00 : f32
      %43 = vector.broadcast %cst_27 : f32 to vector<16x128xf32>
      %44 = arith.subf %43, %23 : vector<16x128xf32>
      %45 = arith.mulf %44, %23 : vector<16x128xf32>
      %46 = math.exp %45 : vector<16x128xf32>
      %47 = arith.mulf %42, %46 : vector<16x128xf32>
      %cst_28 = arith.constant 1.000000e+00 : f32
      %48 = vector.broadcast %cst_28 : f32 to vector<16x128xf32>
      %49 = arith.subf %48, %47 : vector<16x128xf32>
      %cst_29 = arith.constant 0.000000e+00 : f32
      %50 = vector.broadcast %cst_29 : f32 to vector<16x128xf32>
      %51 = arith.cmpf oge, %22, %50 : vector<16x128xf32>
      %cst_30 = arith.constant 0.000000e+00 : f32
      %52 = vector.broadcast %cst_30 : f32 to vector<16x128xf32>
      %53 = arith.subf %52, %49 : vector<16x128xf32>
      %54 = arith.select %51, %49, %53 : vector<16x128xi1>, vector<16x128xf32>
      %cst_31 = arith.constant 1.000000e+00 : f32
      %55 = vector.broadcast %cst_31 : f32 to vector<16x128xf32>
      %56 = arith.addf %55, %54 : vector<16x128xf32>
      %57 = arith.mulf %20, %56 : vector<16x128xf32>
      %58 = arith.truncf %57 : vector<16x128xf32> to vector<16x128xbf16>
      %c0_32 = arith.constant 0 : index
      %c0_33 = arith.constant 0 : index
      %59 = vector.load %arg9[%c0_32, %c0_33] : memref<16x128xbf16, #tpu.memory_space<vmem>>, vector<16x128xbf16>
      tpu.vector_store %arg9[%c0_32, %c0_33], %58 {strides = array<i32>} : memref<16x128xbf16, #tpu.memory_space<vmem>>, vector<16x128xbf16>,
    } else {
    }
    %c0 = arith.constant 0 : index
    %c0_1 = arith.constant 0 : index
    %3 = vector.load %arg6[%c0, %c0_1] : memref<128x128xbf16, #tpu.memory_space<vmem>>, vector<128x128xbf16>
    %c0_2 = arith.constant 0 : index
    %c0_3 = arith.constant 0 : index
    %4 = vector.load %arg7[%c0_2, %c0_3] : memref<1x128xf32, #tpu.memory_space<vmem>>, vector<1x128xf32>
    %c0_4 = arith.constant 0 : index
    %c0_5 = arith.constant 0 : index
    %5 = vector.load %arg9[%c0_4, %c0_5] : memref<16x128xbf16, #tpu.memory_space<vmem>>, vector<16x128xbf16>
    %cst = arith.constant dense<0.000000e+00> : vector<16x128xf32>
    %6 = tpu.matmul %5, %3, %cst {dimension_numbers = #tpu.dot_dimension_numbers<[1], [0], [0], [1], [0, 0, 1, 1], [], []>} : vector<16x128xbf16>, vector<128x128xbf16>, vector<16x128xf32> -> vector<16x128xf32>
    %7 = vector.broadcast %4 : vector<1x128xf32> to vector<16x128xf32>
    %8 = arith.addf %6, %7 : vector<16x128xf32>
    %c0_6 = arith.constant 0 : index
    %c0_7 = arith.constant 0 : index
    %9 = vector.load %arg8[%c0_6, %c0_7] : memref<16x128xf32, #tpu.memory_space<vmem>>, vector<16x128xf32>
    tpu.vector_store %arg8[%c0_6, %c0_7], %8 {strides = array<i32>} : memref<16x128xf32, #tpu.memory_space<vmem>>, vector<16x128xf32>,
    return
  }
  func.func @transform_0(%arg0: i32, %arg1: i32) -> (i32, i32) {
    %c0_i32 = arith.constant 0 : i32
    %c0_i32_0 = arith.constant 0 : i32
    return %arg0, %c0_i32 : i32, i32
  }
  func.func @transform_1(%arg0: i32, %arg1: i32) -> (i32, i32) {
    %c0_i32 = arith.constant 0 : i32
    %c0_i32_0 = arith.constant 0 : i32
    %c0_i32_1 = arith.constant 0 : i32
    return %c0_i32, %c0_i32_0 : i32, i32
  }
  func.func @transform_2(%arg0: i32, %arg1: i32) -> (i32, i32) {
    %c0_i32 = arith.constant 0 : i32
    %c0_i32_0 = arith.constant 0 : i32
    %c0_i32_1 = arith.constant 0 : i32
    return %c0_i32, %c0_i32_0 : i32, i32
  }
  func.func @transform_3(%arg0: i32, %arg1: i32) -> (i32, i32) {
    %c0_i32 = arith.constant 0 : i32
    %c0_i32_0 = arith.constant 0 : i32
    %c0_i32_1 = arith.constant 0 : i32
    return %c0_i32, %c0_i32_0 : i32, i32
  }
  func.func @transform_4(%arg0: i32, %arg1: i32) -> (i32, i32) {
    %c0_i32 = arith.constant 0 : i32
    %c0_i32_0 = arith.constant 0 : i32
    %c0_i32_1 = arith.constant 0 : i32
    return %c0_i32, %c0_i32_0 : i32, i32
  }
  func.func @transform_5(%arg0: i32, %arg1: i32) -> (i32, i32) {
    %c0_i32 = arith.constant 0 : i32
    %c0_i32_0 = arith.constant 0 : i32
    %c0_i32_1 = arith.constant 0 : i32
    return %c0_i32, %c0_i32_0 : i32, i32
  }
  func.func @transform_6(%arg0: i32, %arg1: i32) -> (i32, i32) {
    %c0_i32 = arith.constant 0 : i32
    return %arg0, %arg1 : i32, i32
  }
}

</mosaic_0001>

<llo_original>
// kernel: tpu_custom_call.1
$region0: #{tpu_custom_call.1}
  #allocation0 [shape = 'u32[]', space=smem, size = 0x4, offset = 0x4, fixed_abs, tag = 'smem constant byte address 0x4 - core index']
  #allocation1 [shape = 'u32[72,128]{1,0:T(1,128)}', space=vmem, size = 0x9000, scoped, tag = 'internal scratch']
  #allocation2 [shape = 'bf16[16,128]{1,0:T(8,128)(2,1)}', space=vmem, size = 0x1000, scoped, tag = 'scratch operand']
  %s0 = inlined_call_operand.hbm [shape: bf16[32,288], index: 0, kind: input, shape index: {}]
  %s1 = inlined_call_operand.hbm [shape: bf16[288,1024], index: 1, kind: input, shape index: {}]
  %s2 = inlined_call_operand.hbm [shape: bf16[1024,128], index: 2, kind: input, shape index: {}]
  %s3 = inlined_call_operand.vmem [shape: f32[1,128], index: 3, kind: input, shape index: {}]
  %s4 = inlined_call_operand.hbm [shape: bf16[128,128], index: 4, kind: input, shape index: {}]
  %s5 = inlined_call_operand.vmem [shape: f32[1,128], index: 5, kind: input, shape index: {}]
  %s6 = inlined_call_operand.hbm [shape: f32[32,128], index: 6, kind: output, shape index: {}]
  %s7 = sld [smem:[#allocation0]]
  $region77: #{tpu_custom_call.1} parent=0
    _
  %s9 = ssub.s32 1, %s7
  %s10 = scalar_select 0, %s9, %s7
  $region1: #{tpu_custom_call.1} parent=0
    #allocation3 [shape = 'u8[24576]{0}', space=vmem, size = 0x6000, scoped, tag = 'input window, operand 0']
    #allocation4 [shape = 's32[2]{0}', space=sflag, size = 0x8, scoped, tag = 'scoped memory for tpu_custom_call.1']
    #allocation5 [shape = 's32[2]{0}', space=sflag, size = 0x8, scoped, tag = 'scoped memory for tpu_custom_call.1']
    #allocation6 [shape = 'u8[589824]{0}', space=vmem, size = 0x90000, scoped, tag = 'input window, operand 1, single buffered']
    #allocation7 [shape = 's32[1]{0}', space=sflag, size = 0x4, scoped, tag = 'scoped memory for tpu_custom_call.1']
    #allocation8 [shape = 'u8[262144]{0}', space=vmem, size = 0x40000, scoped, tag = 'input window, operand 2, single buffered']
    #allocation9 [shape = 'u8[32768]{0}', space=vmem, size = 0x8000, scoped, tag = 'input window, operand 4, single buffered']
    #allocation10 [shape = 's32[1]{0}', space=sflag, size = 0x4, scoped, tag = 'scoped memory for tpu_custom_call.1']
    #allocation11 [shape = 'u8[16384]{0}', space=vmem, size = 0x4000, scoped, tag = 'output window, operand 0']
    %11 = vsyncpa [#allocation4], 0
    %s12 = scalar_lea.sflag [#allocation4], 1
    %13 = vsyncpa %s12, 0
    %14 = vsyncpa [#allocation7], 0
    %15 = vsyncpa [#allocation10], 0
    %16 = vsyncpa [#allocation5], 0
    %s17 = scalar_lea.sflag [#allocation5], 1
    %18 = vsyncpa %s17, 0
    loop: start=0, step=1, limit=4
    $region2: #{tpu_custom_call.1} parent=1 // loop_pre_header
      _
    $region3: #{tpu_custom_call.1} parent=1 // loop_header
      %s20 = sphi 0, %s24
      %p21 = scmp.ge.s32.totalorder %s20, 4
      %s27 = sphi 0, %s39
      %s28 = sphi 0, %s35
      %s29 = sphi 0, %s27
      %s30 = sphi 0, %s28
      %s31 = sphi 0, %s29
      %s32 = sphi 0, %s30
      %s42 = sphi 0, %s44
      %s45 = sphi 0, %s42
      %s46 = sphi 0, %s45
      %s62 = sphi 0, %s46
      %s66 = sphi 0, %s66
      %s68 = sphi 0, %s66
      %s69 = sphi 0, %s68
      %s83 = sphi 0, %s69
      %s87 = sphi 0, %s87
      %s89 = sphi 0, %s87
      %s90 = sphi 0, %s89
      %s104 = sphi 0, %s90
      %s108 = sphi 0, %s108
      %s110 = sphi 0, %s108
      %s111 = sphi 0, %s110
      %s125 = sphi 0, %s111
      %s129 = sphi 0, %s129
      %s131 = sphi 0, %s129
      %s132 = sphi 0, %s131
      %s146 = sphi 0, %s132
      %s150 = sphi 0, %s150
      %s152 = sphi 0, %s150
      %s153 = sphi 0, %s152
      %s167 = sphi 0, %s153
      %s175 = sphi 0, %s177
      %s178 = sphi 0, %s175
      %s179 = sphi 0, %s178
      %s195 = sphi 0, %s179
    $region4: #{tpu_custom_call.1} parent=1 // loop_header_branch
      %23 = sbr.rel (%p21) target = $region8
    $region5: #{tpu_custom_call.1} parent=1 // loop_body
      %s25 = ssub.s32 %s20, 1
      %s26 = ssub.s32 %s20, 2
      %s33 = sadd.s32 1, %s28
      %p34 = scmp.ge.s32.totalorder %s33, 1
      %s35 = scalar_select %p34, 0, %s33
      %s36 = sadd.s32 1, %s27
      %s37 = scalar_select %p34, %s36, %s27
      %p38 = scmp.ge.s32.totalorder %s37, 2
      %s39 = scalar_select %p38, 0, %s37
      %s40 = ssub.s32 %s27, %s39
      %p41 = scmp.eq.s32.totalorder %s40, 0
      %s43 = sadd.s32 %s42, 1
      %s44 = scalar_select %p41, %s42, %s43
      %p47 = pneg %p41
      %p48 = scmp.eq.s32.totalorder %s20, 1
      %p49 = por %p47, %p48
      %p50 = scmp.ne.s32.totalorder %s42, %s45
      %p51 = scmp.eq.s32.totalorder %s20, 0
      %p52 = por %p50, %p51
      %p53 = scmp.ne.s32.totalorder %s42, %s45
      %p54 = scmp.eq.s32.totalorder %s25, 1
      %p55 = por %p53, %p54
      %p56 = scmp.ne.s32.totalorder %s45, %s46
      %p57 = scmp.eq.s32.totalorder %s25, 0
      %p58 = por %p56, %p57
      %p59 = scmp.ne.s32.totalorder %s45, %s46
      %p60 = scmp.eq.s32.totalorder %s26, 1
      %p61 = por %p59, %p60
      %p63 = scmp.ne.s32.totalorder %s46, %s62
      %p64 = scmp.eq.s32.totalorder %s26, 0
      %p65 = por %p63, %p64
      %s67 = sadd.s32 %s66, 1
      %p70 = scmp.eq.s32.totalorder %s20, 1
      %p71 = scmp.ne.s32.totalorder %s66, %s68
      %p72 = scmp.eq.s32.totalorder %s20, 0
      %p73 = por %p71, %p72
      %p74 = scmp.ne.s32.totalorder %s66, %s68
      %p75 = scmp.eq.s32.totalorder %s25, 1
      %p76 = por %p74, %p75
      %p77 = scmp.ne.s32.totalorder %s68, %s69
      %p78 = scmp.eq.s32.totalorder %s25, 0
      %p79 = por %p77, %p78
      %p80 = scmp.ne.s32.totalorder %s68, %s69
      %p81 = scmp.eq.s32.totalorder %s26, 1
      %p82 = por %p80, %p81
      %p84 = scmp.ne.s32.totalorder %s69, %s83
      %p85 = scmp.eq.s32.totalorder %s26, 0
      %p86 = por %p84, %p85
      %s88 = sadd.s32 %s87, 1
      %p91 = scmp.eq.s32.totalorder %s20, 1
      %p92 = scmp.ne.s32.totalorder %s87, %s89
      %p93 = scmp.eq.s32.totalorder %s20, 0
      %p94 = por %p92, %p93
      %p95 = scmp.ne.s32.totalorder %s87, %s89
      %p96 = scmp.eq.s32.totalorder %s25, 1
      %p97 = por %p95, %p96
      %p98 = scmp.ne.s32.totalorder %s89, %s90
      %p99 = scmp.eq.s32.totalorder %s25, 0
      %p100 = por %p98, %p99
      %p101 = scmp.ne.s32.totalorder %s89, %s90
      %p102 = scmp.eq.s32.totalorder %s26, 1
      %p103 = por %p101, %p102
      %p105 = scmp.ne.s32.totalorder %s90, %s104
      %p106 = scmp.eq.s32.totalorder %s26, 0
      %p107 = por %p105, %p106
      %s109 = sadd.s32 %s108, 1
      %p112 = scmp.eq.s32.totalorder %s20, 1
      %p113 = scmp.ne.s32.totalorder %s108, %s110
      %p114 = scmp.eq.s32.totalorder %s20, 0
      %p115 = por %p113, %p114
      %p116 = scmp.ne.s32.totalorder %s108, %s110
      %p117 = scmp.eq.s32.totalorder %s25, 1
      %p118 = por %p116, %p117
      %p119 = scmp.ne.s32.totalorder %s110, %s111
      %p120 = scmp.eq.s32.totalorder %s25, 0
      %p121 = por %p119, %p120
      %p122 = scmp.ne.s32.totalorder %s110, %s111
      %p123 = scmp.eq.s32.totalorder %s26, 1
      %p124 = por %p122, %p123
      %p126 = scmp.ne.s32.totalorder %s111, %s125
      %p127 = scmp.eq.s32.totalorder %s26, 0
      %p128 = por %p126, %p127
      %s130 = sadd.s32 %s129, 1
      %p133 = scmp.eq.s32.totalorder %s20, 1
      %p134 = scmp.ne.s32.totalorder %s129, %s131
      %p135 = scmp.eq.s32.totalorder %s20, 0
      %p136 = por %p134, %p135
      %p137 = scmp.ne.s32.totalorder %s129, %s131
      %p138 = scmp.eq.s32.totalorder %s25, 1
      %p139 = por %p137, %p138
      %p140 = scmp.ne.s32.totalorder %s131, %s132
      %p141 = scmp.eq.s32.totalorder %s25, 0
      %p142 = por %p140, %p141
      %p143 = scmp.ne.s32.totalorder %s131, %s132
      %p144 = scmp.eq.s32.totalorder %s26, 1
      %p145 = por %p143, %p144
      %p147 = scmp.ne.s32.totalorder %s132, %s146
      %p148 = scmp.eq.s32.totalorder %s26, 0
      %p149 = por %p147, %p148
      %s151 = sadd.s32 %s150, 1
      %p154 = scmp.eq.s32.totalorder %s20, 1
      %p155 = scmp.ne.s32.totalorder %s150, %s152
      %p156 = scmp.eq.s32.totalorder %s20, 0
      %p157 = por %p155, %p156
      %p158 = scmp.ne.s32.totalorder %s150, %s152
      %p159 = scmp.eq.s32.totalorder %s25, 1
      %p160 = por %p158, %p159
      %p161 = scmp.ne.s32.totalorder %s152, %s153
      %p162 = scmp.eq.s32.totalorder %s25, 0
      %p163 = por %p161, %p162
      %p164 = scmp.ne.s32.totalorder %s152, %s153
      %p165 = scmp.eq.s32.totalorder %s26, 1
      %p166 = por %p164, %p165
      %p168 = scmp.ne.s32.totalorder %s153, %s167
      %p169 = scmp.eq.s32.totalorder %s26, 0
      %p170 = por %p168, %p169
      %s171 = ssub.s32 %s27, %s39
      %s172 = ssub.s32 %s28, %s35
      %s173 = sor.u32 %s171, %s172
      %p174 = scmp.eq.s32.totalorder %s173, 0
      %s176 = sadd.s32 %s175, 1
      %s177 = scalar_select %p174, %s175, %s176
      %p180 = pneg %p174
      %p181 = scmp.eq.s32.totalorder %s20, 1
      %p182 = por %p180, %p181
      %p183 = scmp.ne.s32.totalorder %s175, %s178
      %p184 = scmp.eq.s32.totalorder %s20, 0
      %p185 = por %p183, %p184
      %p186 = scmp.ne.s32.totalorder %s175, %s178
      %p187 = scmp.eq.s32.totalorder %s25, 1
      %p188 = por %p186, %p187
      %p189 = scmp.ne.s32.totalorder %s178, %s179
      %p190 = scmp.eq.s32.totalorder %s25, 0
      %p191 = por %p189, %p190
      %p192 = scmp.ne.s32.totalorder %s178, %s179
      %p193 = scmp.eq.s32.totalorder %s26, 1
      %p194 = por %p192, %p193
      %p196 = scmp.ne.s32.totalorder %s179, %s195
      %p197 = scmp.eq.s32.totalorder %s26, 0
      %p198 = por %p196, %p197
      %p199 = scmp.le.s32.totalorder 1, %s20
      %p200 = scmp.lt.s32.totalorder %s20, 3
      %p201 = pnand %p199, %p200
      %p202 = pneg %p201
      // Predicated region
      $region9: #{tpu_custom_call.1} parent=5 // pred_check
        _
      $region10: #{tpu_custom_call.1} parent=5 // pred_check_branch
        %204 = sbr.rel (%p201) target = $region12
      $region11: #{tpu_custom_call.1} parent=5 // pred_region
        %s205 = ssub.s32 %s20, 1
        // Predicated region
        $region13: #{tpu_custom_call.1} parent=11 // pred_check
          %p206 = pneg %p79
        $region14: #{tpu_custom_call.1} parent=11 // pred_check_branch
          %208 = sbr.rel (%p206) target = $region16
        $region15: #{tpu_custom_call.1} parent=11 // pred_region
          %210 = vsyncadd [#allocation7], 0
          %s211 = sshll.u32 %s1, 4
          %s212 = int_to_ptr.hbm [resolvable:$true] %s211
          %s213 = sshll.u32 [#allocation6], 4
          %s214 = int_to_ptr.vmem [resolvable:$true] %s213
          %219 = dma.hbm_to_vmem [thread:$0]  %s212, 18432, %s214, [#allocation7], 512, 512, 32
        $region16: #{tpu_custom_call.1} parent=11 // pred_fallthru
          _
        // Predicated region
        $region17: #{tpu_custom_call.1} parent=11 // pred_check
          %p220 = pneg %p100
        $region18: #{tpu_custom_call.1} parent=11 // pred_check_branch
          %222 = sbr.rel (%p220) target = $region20
        $region19: #{tpu_custom_call.1} parent=11 // pred_region
          %224 = vsyncadd [#allocation7], 0
          %s225 = sshll.u32 %s2, 4
          %s226 = int_to_ptr.hbm [resolvable:$true] %s225
          %s227 = sshll.u32 [#allocation8], 4
          %s228 = int_to_ptr.vmem [resolvable:$true] %s227
          %233 = dma.hbm_to_vmem [thread:$0]  %s226, 8192, %s228, [#allocation7], 64, 64, 4
        $region20: #{tpu_custom_call.1} parent=11 // pred_fallthru
          _
        // Predicated region
        $region21: #{tpu_custom_call.1} parent=11 // pred_check
          %p234 = pneg %p121
        $region22: #{tpu_custom_call.1} parent=11 // pred_check_branch
          %236 = sbr.rel (%p234) target = $region24
        $region23: #{tpu_custom_call.1} parent=11 // pred_region
          _
        $region24: #{tpu_custom_call.1} parent=11 // pred_fallthru
          _
        // Predicated region
        $region25: #{tpu_custom_call.1} parent=11 // pred_check
          %p237 = pneg %p142
        $region26: #{tpu_custom_call.1} parent=11 // pred_check_branch
          %239 = sbr.rel (%p237) target = $region28
        $region27: #{tpu_custom_call.1} parent=11 // pred_region
          %241 = vsyncadd [#allocation10], 0
          %s242 = sshll.u32 %s4, 4
          %s243 = int_to_ptr.hbm [resolvable:$true] %s242
          %s244 = sshll.u32 [#allocation9], 4
          %s245 = int_to_ptr.vmem [resolvable:$true] %s244
          %250 = dma.hbm_to_vmem [thread:$0]  %s243, 1024, %s245, [#allocation10], 64, 64, 4
        $region28: #{tpu_custom_call.1} parent=11 // pred_fallthru
          _
        // Predicated region
        $region29: #{tpu_custom_call.1} parent=11 // pred_check
          %p251 = pneg %p163
        $region30: #{tpu_custom_call.1} parent=11 // pred_check_branch
          %253 = sbr.rel (%p251) target = $region32
        $region31: #{tpu_custom_call.1} parent=11 // pred_region
          _
        $region32: #{tpu_custom_call.1} parent=11 // pred_fallthru
          _
      $region12: #{tpu_custom_call.1} parent=5 // pred_fallthru
        _
      %p254 = scmp.lt.s32.totalorder %s20, 2
      // Predicated region
      $region33: #{tpu_custom_call.1} parent=5 // pred_check
        %p255 = pneg %p254
      $region34: #{tpu_custom_call.1} parent=5 // pred_check_branch
        %257 = sbr.rel (%p255) target = $region36
      $region35: #{tpu_custom_call.1} parent=5 // pred_region
        // Predicated region
        $region37: #{tpu_custom_call.1} parent=35 // pred_check
          %p258 = pneg %p52
        $region38: #{tpu_custom_call.1} parent=35 // pred_check_branch
          %260 = sbr.rel (%p258) target = $region40
        $region39: #{tpu_custom_call.1} parent=35 // pred_region
          %s261 = sand.u32 %s42, 1
          %s262 = scalar_lea.sflag [#allocation4], %s261
          %s263 = sand.u32 %s42, 1
          %s264 = smul.addr %s263, 24
          %s265 = scalar_lea.vmem [#allocation3], %s264
          %s266 = smul.u32 2, %s27
          %268 = vsyncadd %s262, 0
          %s269 = smul.addr %s266, 3
          %s270 = smul.addr %s269, 4
          %s271 = scalar_lea.hbm %s0, %s270
          %s272 = sshll.u32 %s271, 4
          %s273 = int_to_ptr.hbm [resolvable:$true] %s272
          %s274 = sshll.u32 %s265, 4
          %s275 = int_to_ptr.vmem [resolvable:$true] %s274
          %280 = dma.hbm_to_vmem [thread:$0]  %s273, 384, %s275, %s262, 192, 192, 12
        $region40: #{tpu_custom_call.1} parent=35 // pred_fallthru
          _
      $region36: #{tpu_custom_call.1} parent=5 // pred_fallthru
        _
      %p281 = scmp.le.s32.totalorder 1, %s20
      %p282 = scmp.lt.s32.totalorder %s20, 3
      %p283 = pnand %p281, %p282
      %p284 = pneg %p283
      // Predicated region
      $region41: #{tpu_custom_call.1} parent=5 // pred_check
        _
      $region42: #{tpu_custom_call.1} parent=5 // pred_check_branch
        %286 = sbr.rel (%p283) target = $region44
      $region43: #{tpu_custom_call.1} parent=5 // pred_region
        %s287 = ssub.s32 %s20, 1
        %s288 = sand.u32 %s45, 1
        %s289 = scalar_lea.sflag [#allocation4], %s288
        %s290 = sand.u32 %s45, 1
        %s291 = smul.addr %s290, 24
        %s292 = scalar_lea.vmem [#allocation3], %s291
        // Predicated region
        $region45: #{tpu_custom_call.1} parent=43 // pred_check
          %p293 = pneg %p58
        $region46: #{tpu_custom_call.1} parent=43 // pred_check_branch
          %295 = sbr.rel (%p293) target = $region48
        $region47: #{tpu_custom_call.1} parent=43 // pred_region
          %297 = dma.done %s289, 384
        $region48: #{tpu_custom_call.1} parent=43 // pred_fallthru
          _
        // Predicated region
        $region49: #{tpu_custom_call.1} parent=43 // pred_check
          %p298 = pneg %p79
        $region50: #{tpu_custom_call.1} parent=43 // pred_check_branch
          %300 = sbr.rel (%p298) target = $region52
        $region51: #{tpu_custom_call.1} parent=43 // pred_region
          %302 = dma.done [#allocation7], 18432
        $region52: #{tpu_custom_call.1} parent=43 // pred_fallthru
          _
        // Predicated region
        $region53: #{tpu_custom_call.1} parent=43 // pred_check
          %p303 = pneg %p100
        $region54: #{tpu_custom_call.1} parent=43 // pred_check_branch
          %305 = sbr.rel (%p303) target = $region56
        $region55: #{tpu_custom_call.1} parent=43 // pred_region
          %307 = dma.done [#allocation7], 8192
        $region56: #{tpu_custom_call.1} parent=43 // pred_fallthru
          _
        // Predicated region
        $region57: #{tpu_custom_call.1} parent=43 // pred_check
          %p308 = pneg %p142
        $region58: #{tpu_custom_call.1} parent=43 // pred_check_branch
          %310 = sbr.rel (%p308) target = $region60
        $region59: #{tpu_custom_call.1} parent=43 // pred_region
          %312 = dma.done [#allocation10], 1024
        $region60: #{tpu_custom_call.1} parent=43 // pred_fallthru
          _
        %s313 = sand.u32 %s45, 1
        %s314 = scalar_lea.sflag [#allocation4], %s313
        %s315 = sand.u32 %s45, 1
        %s316 = smul.addr %s315, 24
        %s317 = scalar_lea.vmem [#allocation3], %s316
        %p318 = pneg %p58
        %p319 = pneg %p55
        %p320 = pneg %p79
        %p321 = pneg %p76
        %p322 = pneg %p100
        %p323 = pneg %p97
        %p324 = pneg %p121
        %p325 = pneg %p118
        %p326 = pneg %p142
        %p327 = pneg %p139
        %p328 = pneg %p163
        %p329 = pneg %p160
        %p330 = pneg %p191
        %p331 = pneg %p188
        %s332 = sand.u32 %s178, 1
        %s333 = scalar_lea.sflag [#allocation5], %s332
        %s334 = sand.u32 %s178, 1
        %s335 = smul.addr %s334, 16
        %s336 = scalar_lea.vmem [#allocation11], %s335
        %s337 = smul.u32 2, %s29
        %s338 = smul.u32 2, %s29
        %p340 = scmp.eq.s32.totalorder %s30, 0
        // Predicated region
        $region61: #{tpu_custom_call.1} parent=43 // pred_check
          %p341 = pneg %p340
        $region62: #{tpu_custom_call.1} parent=43 // pred_check_branch
          %343 = sbr.rel (%p341) target = $region64
        $region63: #{tpu_custom_call.1} parent=43 // pred_region
          %v344 = vld [vmem:[%s292] sm:$0xff]
          %v345 = vld [vmem:[%s292 + $0x8] sm:$0xf]
          %v346 = vld [vmem:[%s292 + $0xc] sm:$0xff]
          %v347 = vld [vmem:[%s292 + $0x14] sm:$0xf]
          %v348 = vld [vmem:[#allocation6] sm:$0xff]
          %v349 = vld [vmem:[#allocation6 + $0x8] sm:$0xff]
          %v350 = vld [vmem:[#allocation6 + $0x10] sm:$0xff]
          %v351 = vld [vmem:[#allocation6 + $0x18] sm:$0xff]
          %v352 = vld [vmem:[#allocation6 + $0x20] sm:$0xff]
          %v353 = vld [vmem:[#allocation6 + $0x28] sm:$0xff]
          %v354 = vld [vmem:[#allocation6 + $0x30] sm:$0xff]
          %v355 = vld [vmem:[#allocation6 + $0x38] sm:$0xff]
          %v356 = vld [vmem:[#allocation6 + $0x40] sm:$0xff]
          %v357 = vld [vmem:[#allocation6 + $0x48] sm:$0xff]
          %v358 = vld [vmem:[#allocation6 + $0x50] sm:$0xff]
          %v359 = vld [vmem:[#allocation6 + $0x58] sm:$0xff]
          %v360 = vld [vmem:[#allocation6 + $0x60] sm:$0xff]
          %v361 = vld [vmem:[#allocation6 + $0x68] sm:$0xff]
          %v362 = vld [vmem:[#allocation6 + $0x70] sm:$0xff]
          %v363 = vld [vmem:[#allocation6 + $0x78] sm:$0xff]
          %v364 = vld [vmem:[#allocation6 + $0x80] sm:$0xff]
          %v365 = vld [vmem:[#allocation6 + $0x88] sm:$0xff]
          %v366 = vld [vmem:[#allocation6 + $0x90] sm:$0xff]
          %v367 = vld [vmem:[#allocation6 + $0x98] sm:$0xff]
          %v368 = vld [vmem:[#allocation6 + $0xa0] sm:$0xff]
          %v369 = vld [vmem:[#allocation6 + $0xa8] sm:$0xff]
          %v370 = vld [vmem:[#allocation6 + $0xb0] sm:$0xff]
          %v371 = vld [vmem:[#allocation6 + $0xb8] sm:$0xff]
          %v372 = vld [vmem:[#allocation6 + $0xc0] sm:$0xff]
          %v373 = vld [vmem:[#allocation6 + $0xc8] sm:$0xff]
          %v374 = vld [vmem:[#allocation6 + $0xd0] sm:$0xff]
          %v375 = vld [vmem:[#allocation6 + $0xd8] sm:$0xff]
          %v376 = vld [vmem:[#allocation6 + $0xe0] sm:$0xff]
          %v377 = vld [vmem:[#allocation6 + $0xe8] sm:$0xff]
          %v378 = vld [vmem:[#allocation6 + $0xf0] sm:$0xff]
          %v379 = vld [vmem:[#allocation6 + $0xf8] sm:$0xff]
          %v380 = vld [vmem:[#allocation6 + $0x100] sm:$0xff]
          %v381 = vld [vmem:[#allocation6 + $0x108] sm:$0xff]
          %v382 = vld [vmem:[#allocation6 + $0x110] sm:$0xff]
          %v383 = vld [vmem:[#allocation6 + $0x118] sm:$0xff]
          %v384 = vld [vmem:[#allocation6 + $0x120] sm:$0xff]
          %v385 = vld [vmem:[#allocation6 + $0x128] sm:$0xff]
          %v386 = vld [vmem:[#allocation6 + $0x130] sm:$0xff]
          %v387 = vld [vmem:[#allocation6 + $0x138] sm:$0xff]
          %v388 = vld [vmem:[#allocation6 + $0x140] sm:$0xff]
          %v389 = vld [vmem:[#allocation6 + $0x148] sm:$0xff]
          %v390 = vld [vmem:[#allocation6 + $0x150] sm:$0xff]
          %v391 = vld [vmem:[#allocation6 + $0x158] sm:$0xff]
          %v392 = vld [vmem:[#allocation6 + $0x160] sm:$0xff]
          %v393 = vld [vmem:[#allocation6 + $0x168] sm:$0xff]
          %v394 = vld [vmem:[#allocation6 + $0x170] sm:$0xff]
          %v395 = vld [vmem:[#allocation6 + $0x178] sm:$0xff]
          %v396 = vld [vmem:[#allocation6 + $0x180] sm:$0xff]
          %v397 = vld [vmem:[#allocation6 + $0x188] sm:$0xff]
          %v398 = vld [vmem:[#allocation6 + $0x190] sm:$0xff]
          %v399 = vld [vmem:[#allocation6 + $0x198] sm:$0xff]
          %v400 = vld [vmem:[#allocation6 + $0x1a0] sm:$0xff]
          %v401 = vld [vmem:[#allocation6 + $0x1a8] sm:$0xff]
          %v402 = vld [vmem:[#allocation6 + $0x1b0] sm:$0xff]
          %v403 = vld [vmem:[#allocation6 + $0x1b8] sm:$0xff]
          %v404 = vld [vmem:[#allocation6 + $0x1c0] sm:$0xff]
          %v405 = vld [vmem:[#allocation6 + $0x1c8] sm:$0xff]
          %v406 = vld [vmem:[#allocation6 + $0x1d0] sm:$0xff]
          %v407 = vld [vmem:[#allocation6 + $0x1d8] sm:$0xff]
          %v408 = vld [vmem:[#allocation6 + $0x1e0] sm:$0xff]
          %v409 = vld [vmem:[#allocation6 + $0x1e8] sm:$0xff]
          %v410 = vld [vmem:[#allocation6 + $0x1f0] sm:$0xff]
          %v411 = vld [vmem:[#allocation6 + $0x1f8] sm:$0xff]
          %v412 = vld [vmem:[#allocation6 + $0x200] sm:$0xff]
          %v413 = vld [vmem:[#allocation6 + $0x208] sm:$0xff]
          %v414 = vld [vmem:[#allocation6 + $0x210] sm:$0xff]
          %v415 = vld [vmem:[#allocation6 + $0x218] sm:$0xff]
          %v416 = vld [vmem:[#allocation6 + $0x220] sm:$0xff]
          %v417 = vld [vmem:[#allocation6 + $0x228] sm:$0xff]
          %v418 = vld [vmem:[#allocation6 + $0x230] sm:$0xff]
          %v419 = vld [vmem:[#allocation6 + $0x238] sm:$0xff]
          %v420 = vld [vmem:[#allocation6 + $0x240] sm:$0xff]
          %v421 = vld [vmem:[#allocation6 + $0x248] sm:$0xff]
          %v422 = vld [vmem:[#allocation6 + $0x250] sm:$0xff]
          %v423 = vld [vmem:[#allocation6 + $0x258] sm:$0xff]
          %v424 = vld [vmem:[#allocation6 + $0x260] sm:$0xff]
          %v425 = vld [vmem:[#allocation6 + $0x268] sm:$0xff]
          %v426 = vld [vmem:[#allocation6 + $0x270] sm:$0xff]
          %v427 = vld [vmem:[#allocation6 + $0x278] sm:$0xff]
          %v428 = vld [vmem:[#allocation6 + $0x280] sm:$0xff]
          %v429 = vld [vmem:[#allocation6 + $0x288] sm:$0xff]
          %v430 = vld [vmem:[#allocation6 + $0x290] sm:$0xff]
          %v431 = vld [vmem:[#allocation6 + $0x298] sm:$0xff]
          %v432 = vld [vmem:[#allocation6 + $0x2a0] sm:$0xff]
          %v433 = vld [vmem:[#allocation6 + $0x2a8] sm:$0xff]
          %v434 = vld [vmem:[#allocation6 + $0x2b0] sm:$0xff]
          %v435 = vld [vmem:[#allocation6 + $0x2b8] sm:$0xff]
          %v436 = vld [vmem:[#allocation6 + $0x2c0] sm:$0xff]
          %v437 = vld [vmem:[#allocation6 + $0x2c8] sm:$0xff]
          %v438 = vld [vmem:[#allocation6 + $0x2d0] sm:$0xff]
          %v439 = vld [vmem:[#allocation6 + $0x2d8] sm:$0xff]
          %v440 = vld [vmem:[#allocation6 + $0x2e0] sm:$0xff]
          %v441 = vld [vmem:[#allocation6 + $0x2e8] sm:$0xff]
          %v442 = vld [vmem:[#allocation6 + $0x2f0] sm:$0xff]
          %v443 = vld [vmem:[#allocation6 + $0x2f8] sm:$0xff]
          %v444 = vld [vmem:[#allocation6 + $0x300] sm:$0xff]
          %v445 = vld [vmem:[#allocation6 + $0x308] sm:$0xff]
          %v446 = vld [vmem:[#allocation6 + $0x310] sm:$0xff]
          %v447 = vld [vmem:[#allocation6 + $0x318] sm:$0xff]
          %v448 = vld [vmem:[#allocation6 + $0x320] sm:$0xff]
          %v449 = vld [vmem:[#allocation6 + $0x328] sm:$0xff]
          %v450 = vld [vmem:[#allocation6 + $0x330] sm:$0xff]
          %v451 = vld [vmem:[#allocation6 + $0x338] sm:$0xff]
          %v452 = vld [vmem:[#allocation6 + $0x340] sm:$0xff]
          %v453 = vld [vmem:[#allocation6 + $0x348] sm:$0xff]
          %v454 = vld [vmem:[#allocation6 + $0x350] sm:$0xff]
          %v455 = vld [vmem:[#allocation6 + $0x358] sm:$0xff]
          %v456 = vld [vmem:[#allocation6 + $0x360] sm:$0xff]
          %v457 = vld [vmem:[#allocation6 + $0x368] sm:$0xff]
          %v458 = vld [vmem:[#allocation6 + $0x370] sm:$0xff]
          %v459 = vld [vmem:[#allocation6 + $0x378] sm:$0xff]
          %v460 = vld [vmem:[#allocation6 + $0x380] sm:$0xff]
          %v461 = vld [vmem:[#allocation6 + $0x388] sm:$0xff]
          %v462 = vld [vmem:[#allocation6 + $0x390] sm:$0xff]
          %v463 = vld [vmem:[#allocation6 + $0x398] sm:$0xff]
          %v464 = vld [vmem:[#allocation6 + $0x3a0] sm:$0xff]
          %v465 = vld [vmem:[#allocation6 + $0x3a8] sm:$0xff]
          %v466 = vld [vmem:[#allocation6 + $0x3b0] sm:$0xff]
          %v467 = vld [vmem:[#allocation6 + $0x3b8] sm:$0xff]
          %v468 = vld [vmem:[#allocation6 + $0x3c0] sm:$0xff]
          %v469 = vld [vmem:[#allocation6 + $0x3c8] sm:$0xff]
          %v470 = vld [vmem:[#allocation6 + $0x3d0] sm:$0xff]
          %v471 = vld [vmem:[#allocation6 + $0x3d8] sm:$0xff]
          %v472 = vld [vmem:[#allocation6 + $0x3e0] sm:$0xff]
          %v473 = vld [vmem:[#allocation6 + $0x3e8] sm:$0xff]
          %v474 = vld [vmem:[#allocation6 + $0x3f0] sm:$0xff]
          %v475 = vld [vmem:[#allocation6 + $0x3f8] sm:$0xff]
          %v476 = vld [vmem:[#allocation6 + $0x400] sm:$0xff]
          %v477 = vld [vmem:[#allocation6 + $0x408] sm:$0xff]
          %v478 = vld [vmem:[#allocation6 + $0x410] sm:$0xff]
          %v479 = vld [vmem:[#allocation6 + $0x418] sm:$0xff]
          %v480 = vld [vmem:[#allocation6 + $0x420] sm:$0xff]
          %v481 = vld [vmem:[#allocation6 + $0x428] sm:$0xff]
          %v482 = vld [vmem:[#allocation6 + $0x430] sm:$0xff]
          %v483 = vld [vmem:[#allocation6 + $0x438] sm:$0xff]
          %v484 = vld [vmem:[#allocation6 + $0x440] sm:$0xff]
          %v485 = vld [vmem:[#allocation6 + $0x448] sm:$0xff]
          %v486 = vld [vmem:[#allocation6 + $0x450] sm:$0xff]
          %v487 = vld [vmem:[#allocation6 + $0x458] sm:$0xff]
          %v488 = vld [vmem:[#allocation6 + $0x460] sm:$0xff]
          %v489 = vld [vmem:[#allocation6 + $0x468] sm:$0xff]
          %v490 = vld [vmem:[#allocation6 + $0x470] sm:$0xff]
          %v491 = vld [vmem:[#allocation6 + $0x478] sm:$0xff]
          %v496 = vunpack.c.l.b16 %v344
          %v497 = vunpack.c.h.b16 %v344
          %v498 = vunpack.c.l.b16 %v345
          %v499 = vunpack.c.l.b16 %v346
          %v500 = vunpack.c.h.b16 %v346
          %v501 = vunpack.c.l.b16 %v347
          %v502 = vpack.c.b16 %v499, %v496
          %v503 = vpack.c.b16 %v500, %v497
          %v504 = vpack.c.b16 %v501, %v498
          %v651 = vunpack.c.l.b16 %v348
          %v652 = vunpack.c.h.b16 %v348
          %v653 = vunpack.c.l.b16 %v349
          %v654 = vunpack.c.h.b16 %v349
          %v655 = vunpack.c.l.b16 %v350
          %v656 = vunpack.c.h.b16 %v350
          %v657 = vunpack.c.l.b16 %v351
          %v658 = vunpack.c.h.b16 %v351
          %v659 = vunpack.c.l.b16 %v352
          %v660 = vunpack.c.h.b16 %v352
          %v661 = vunpack.c.l.b16 %v353
          %v662 = vunpack.c.h.b16 %v353
          %v663 = vunpack.c.l.b16 %v354
          %v664 = vunpack.c.h.b16 %v354
          %v665 = vunpack.c.l.b16 %v355
          %v666 = vunpack.c.h.b16 %v355
          %v667 = vunpack.c.l.b16 %v356
          %v668 = vunpack.c.h.b16 %v356
          %v669 = vunpack.c.l.b16 %v357
          %v670 = vunpack.c.h.b16 %v357
          %v671 = vunpack.c.l.b16 %v358
          %v672 = vunpack.c.h.b16 %v358
          %v673 = vunpack.c.l.b16 %v359
          %v674 = vunpack.c.h.b16 %v359
          %v675 = vunpack.c.l.b16 %v360
          %v676 = vunpack.c.h.b16 %v360
          %v677 = vunpack.c.l.b16 %v361
          %v678 = vunpack.c.h.b16 %v361
          %v679 = vunpack.c.l.b16 %v362
          %v680 = vunpack.c.h.b16 %v362
          %v681 = vunpack.c.l.b16 %v363
          %v682 = vunpack.c.h.b16 %v363
          %v683 = vunpack.c.l.b16 %v364
          %v684 = vunpack.c.h.b16 %v364
          %v685 = vunpack.c.l.b16 %v365
          %v686 = vunpack.c.h.b16 %v365
          %v687 = vunpack.c.l.b16 %v366
          %v688 = vunpack.c.h.b16 %v366
          %v689 = vunpack.c.l.b16 %v367
          %v690 = vunpack.c.h.b16 %v367
          %v691 = vunpack.c.l.b16 %v368
          %v692 = vunpack.c.h.b16 %v368
          %v693 = vunpack.c.l.b16 %v369
          %v694 = vunpack.c.h.b16 %v369
          %v695 = vunpack.c.l.b16 %v370
          %v696 = vunpack.c.h.b16 %v370
          %v697 = vunpack.c.l.b16 %v371
          %v698 = vunpack.c.h.b16 %v371
          %v699 = vunpack.c.l.b16 %v372
          %v700 = vunpack.c.h.b16 %v372
          %v701 = vunpack.c.l.b16 %v373
          %v702 = vunpack.c.h.b16 %v373
          %v703 = vunpack.c.l.b16 %v374
          %v704 = vunpack.c.h.b16 %v374
          %v705 = vunpack.c.l.b16 %v375
          %v706 = vunpack.c.h.b16 %v375
          %v707 = vunpack.c.l.b16 %v376
          %v708 = vunpack.c.h.b16 %v376
          %v709 = vunpack.c.l.b16 %v377
          %v710 = vunpack.c.h.b16 %v377
          %v711 = vunpack.c.l.b16 %v378
          %v712 = vunpack.c.h.b16 %v378
          %v713 = vunpack.c.l.b16 %v379
          %v714 = vunpack.c.h.b16 %v379
          %v715 = vunpack.c.l.b16 %v380
          %v716 = vunpack.c.h.b16 %v380
          %v717 = vunpack.c.l.b16 %v381
          %v718 = vunpack.c.h.b16 %v381
          %v719 = vunpack.c.l.b16 %v382
          %v720 = vunpack.c.h.b16 %v382
          %v721 = vunpack.c.l.b16 %v383
          %v722 = vunpack.c.h.b16 %v383
          %v723 = vunpack.c.l.b16 %v384
          %v724 = vunpack.c.h.b16 %v384
          %v725 = vunpack.c.l.b16 %v385
          %v726 = vunpack.c.h.b16 %v385
          %v727 = vunpack.c.l.b16 %v386
          %v728 = vunpack.c.h.b16 %v386
          %v729 = vunpack.c.l.b16 %v387
          %v730 = vunpack.c.h.b16 %v387
          %v731 = vunpack.c.l.b16 %v388
          %v732 = vunpack.c.h.b16 %v388
          %v733 = vunpack.c.l.b16 %v389
          %v734 = vunpack.c.h.b16 %v389
          %v735 = vunpack.c.l.b16 %v390
          %v736 = vunpack.c.h.b16 %v390
          %v737 = vunpack.c.l.b16 %v391
          %v738 = vunpack.c.h.b16 %v391
          %v739 = vunpack.c.l.b16 %v392
          %v740 = vunpack.c.h.b16 %v392
          %v741 = vunpack.c.l.b16 %v393
          %v742 = vunpack.c.h.b16 %v393
          %v743 = vunpack.c.l.b16 %v394
          %v744 = vunpack.c.h.b16 %v394
          %v745 = vunpack.c.l.b16 %v395
          %v746 = vunpack.c.h.b16 %v395
          %v747 = vunpack.c.l.b16 %v396
          %v748 = vunpack.c.h.b16 %v396
          %v749 = vunpack.c.l.b16 %v397
          %v750 = vunpack.c.h.b16 %v397
          %v751 = vunpack.c.l.b16 %v398
          %v752 = vunpack.c.h.b16 %v398
          %v753 = vunpack.c.l.b16 %v399
          %v754 = vunpack.c.h.b16 %v399
          %v755 = vunpack.c.l.b16 %v400
          %v756 = vunpack.c.h.b16 %v400
          %v757 = vunpack.c.l.b16 %v401
          %v758 = vunpack.c.h.b16 %v401
          %v759 = vunpack.c.l.b16 %v402
          %v760 = vunpack.c.h.b16 %v402
          %v761 = vunpack.c.l.b16 %v403
          %v762 = vunpack.c.h.b16 %v403
          %v763 = vunpack.c.l.b16 %v404
          %v764 = vunpack.c.h.b16 %v404
          %v765 = vunpack.c.l.b16 %v405
          %v766 = vunpack.c.h.b16 %v405
          %v767 = vunpack.c.l.b16 %v406
          %v768 = vunpack.c.h.b16 %v406
          %v769 = vunpack.c.l.b16 %v407
          %v770 = vunpack.c.h.b16 %v407
          %v771 = vunpack.c.l.b16 %v408
          %v772 = vunpack.c.h.b16 %v408
          %v773 = vunpack.c.l.b16 %v409
          %v774 = vunpack.c.h.b16 %v409
          %v775 = vunpack.c.l.b16 %v410
          %v776 = vunpack.c.h.b16 %v410
          %v777 = vunpack.c.l.b16 %v411
          %v778 = vunpack.c.h.b16 %v411
          %v779 = vunpack.c.l.b16 %v412
          %v780 = vunpack.c.h.b16 %v412
          %v781 = vunpack.c.l.b16 %v413
          %v782 = vunpack.c.h.b16 %v413
          %v783 = vunpack.c.l.b16 %v414
          %v784 = vunpack.c.h.b16 %v414
          %v785 = vunpack.c.l.b16 %v415
          %v786 = vunpack.c.h.b16 %v415
          %v787 = vunpack.c.l.b16 %v416
          %v788 = vunpack.c.h.b16 %v416
          %v789 = vunpack.c.l.b16 %v417
          %v790 = vunpack.c.h.b16 %v417
          %v791 = vunpack.c.l.b16 %v418
          %v792 = vunpack.c.h.b16 %v418
          %v793 = vunpack.c.l.b16 %v419
          %v794 = vunpack.c.h.b16 %v419
          %v795 = vunpack.c.l.b16 %v420
          %v796 = vunpack.c.h.b16 %v420
          %v797 = vunpack.c.l.b16 %v421
          %v798 = vunpack.c.h.b16 %v421
          %v799 = vunpack.c.l.b16 %v422
          %v800 = vunpack.c.h.b16 %v422
          %v801 = vunpack.c.l.b16 %v423
          %v802 = vunpack.c.h.b16 %v423
          %v803 = vunpack.c.l.b16 %v424
          %v804 = vunpack.c.h.b16 %v424
          %v805 = vunpack.c.l.b16 %v425
          %v806 = vunpack.c.h.b16 %v425
          %v807 = vunpack.c.l.b16 %v426
          %v808 = vunpack.c.h.b16 %v426
          %v809 = vunpack.c.l.b16 %v427
          %v810 = vunpack.c.h.b16 %v427
          %v811 = vunpack.c.l.b16 %v428
          %v812 = vunpack.c.h.b16 %v428
          %v813 = vunpack.c.l.b16 %v429
          %v814 = vunpack.c.h.b16 %v429
          %v815 = vunpack.c.l.b16 %v430
          %v816 = vunpack.c.h.b16 %v430
          %v817 = vunpack.c.l.b16 %v431
          %v818 = vunpack.c.h.b16 %v431
          %v819 = vunpack.c.l.b16 %v432
          %v820 = vunpack.c.h.b16 %v432
          %v821 = vunpack.c.l.b16 %v433
          %v822 = vunpack.c.h.b16 %v433
          %v823 = vunpack.c.l.b16 %v434
          %v824 = vunpack.c.h.b16 %v434
          %v825 = vunpack.c.l.b16 %v435
          %v826 = vunpack.c.h.b16 %v435
          %v827 = vunpack.c.l.b16 %v436
          %v828 = vunpack.c.h.b16 %v436
          %v829 = vunpack.c.l.b16 %v437
          %v830 = vunpack.c.h.b16 %v437
          %v831 = vunpack.c.l.b16 %v438
          %v832 = vunpack.c.h.b16 %v438
          %v833 = vunpack.c.l.b16 %v439
          %v834 = vunpack.c.h.b16 %v439
          %v835 = vunpack.c.l.b16 %v440
          %v836 = vunpack.c.h.b16 %v440
          %v837 = vunpack.c.l.b16 %v441
          %v838 = vunpack.c.h.b16 %v441
          %v839 = vunpack.c.l.b16 %v442
          %v840 = vunpack.c.h.b16 %v442
          %v841 = vunpack.c.l.b16 %v443
          %v842 = vunpack.c.h.b16 %v443
          %v843 = vunpack.c.l.b16 %v444
          %v844 = vunpack.c.h.b16 %v444
          %v845 = vunpack.c.l.b16 %v445
          %v846 = vunpack.c.h.b16 %v445
          %v847 = vunpack.c.l.b16 %v446
          %v848 = vunpack.c.h.b16 %v446
          %v849 = vunpack.c.l.b16 %v447
          %v850 = vunpack.c.h.b16 %v447
          %v851 = vunpack.c.l.b16 %v448
          %v852 = vunpack.c.h.b16 %v448
          %v853 = vunpack.c.l.b16 %v449
          %v854 = vunpack.c.h.b16 %v449
          %v855 = vunpack.c.l.b16 %v450
          %v856 = vunpack.c.h.b16 %v450
          %v857 = vunpack.c.l.b16 %v451
          %v858 = vunpack.c.h.b16 %v451
          %v859 = vunpack.c.l.b16 %v452
          %v860 = vunpack.c.h.b16 %v452
          %v861 = vunpack.c.l.b16 %v453
          %v862 = vunpack.c.h.b16 %v453
          %v863 = vunpack.c.l.b16 %v454
          %v864 = vunpack.c.h.b16 %v454
          %v865 = vunpack.c.l.b16 %v455
          %v866 = vunpack.c.h.b16 %v455
          %v867 = vunpack.c.l.b16 %v456
          %v868 = vunpack.c.h.b16 %v456
          %v869 = vunpack.c.l.b16 %v457
          %v870 = vunpack.c.h.b16 %v457
          %v871 = vunpack.c.l.b16 %v458
          %v872 = vunpack.c.h.b16 %v458
          %v873 = vunpack.c.l.b16 %v459
          %v874 = vunpack.c.h.b16 %v459
          %v875 = vunpack.c.l.b16 %v460
          %v876 = vunpack.c.h.b16 %v460
          %v877 = vunpack.c.l.b16 %v461
          %v878 = vunpack.c.h.b16 %v461
          %v879 = vunpack.c.l.b16 %v462
          %v880 = vunpack.c.h.b16 %v462
          %v881 = vunpack.c.l.b16 %v463
          %v882 = vunpack.c.h.b16 %v463
          %v883 = vunpack.c.l.b16 %v464
          %v884 = vunpack.c.h.b16 %v464
          %v885 = vunpack.c.l.b16 %v465
          %v886 = vunpack.c.h.b16 %v465
          %v887 = vunpack.c.l.b16 %v466
          %v888 = vunpack.c.h.b16 %v466
          %v889 = vunpack.c.l.b16 %v467
          %v890 = vunpack.c.h.b16 %v467
          %v891 = vunpack.c.l.b16 %v468
          %v892 = vunpack.c.h.b16 %v468
          %v893 = vunpack.c.l.b16 %v469
          %v894 = vunpack.c.h.b16 %v469
          %v895 = vunpack.c.l.b16 %v470
          %v896 = vunpack.c.h.b16 %v470
          %v897 = vunpack.c.l.b16 %v471
          %v898 = vunpack.c.h.b16 %v471
          %v899 = vunpack.c.l.b16 %v472
          %v900 = vunpack.c.h.b16 %v472
          %v901 = vunpack.c.l.b16 %v473
          %v902 = vunpack.c.h.b16 %v473
          %v903 = vunpack.c.l.b16 %v474
          %v904 = vunpack.c.h.b16 %v474
          %v905 = vunpack.c.l.b16 %v475
          %v906 = vunpack.c.h.b16 %v475
          %v907 = vunpack.c.l.b16 %v476
          %v908 = vunpack.c.h.b16 %v476
          %v909 = vunpack.c.l.b16 %v477
          %v910 = vunpack.c.h.b16 %v477
          %v911 = vunpack.c.l.b16 %v478
          %v912 = vunpack.c.h.b16 %v478
          %v913 = vunpack.c.l.b16 %v479
          %v914 = vunpack.c.h.b16 %v479
          %v915 = vunpack.c.l.b16 %v480
          %v916 = vunpack.c.h.b16 %v480
          %v917 = vunpack.c.l.b16 %v481
          %v918 = vunpack.c.h.b16 %v481
          %v919 = vunpack.c.l.b16 %v482
          %v920 = vunpack.c.h.b16 %v482
          %v921 = vunpack.c.l.b16 %v483
          %v922 = vunpack.c.h.b16 %v483
          %v923 = vunpack.c.l.b16 %v484
          %v924 = vunpack.c.h.b16 %v484
          %v925 = vunpack.c.l.b16 %v485
          %v926 = vunpack.c.h.b16 %v485
          %v927 = vunpack.c.l.b16 %v486
          %v928 = vunpack.c.h.b16 %v486
          %v929 = vunpack.c.l.b16 %v487
          %v930 = vunpack.c.h.b16 %v487
          %v931 = vunpack.c.l.b16 %v488
          %v932 = vunpack.c.h.b16 %v488
          %v933 = vunpack.c.l.b16 %v489
          %v934 = vunpack.c.h.b16 %v489
          %v935 = vunpack.c.l.b16 %v490
          %v936 = vunpack.c.h.b16 %v490
          %v937 = vunpack.c.l.b16 %v491
          %v938 = vunpack.c.h.b16 %v491
          %v939 = vpack.c.b16 %v659, %v651
          %v940 = vpack.c.b16 %v660, %v652
          %v941 = vpack.c.b16 %v661, %v653
          %v942 = vpack.c.b16 %v662, %v654
          %v943 = vpack.c.b16 %v663, %v655
          %v944 = vpack.c.b16 %v664, %v656
          %v945 = vpack.c.b16 %v665, %v657
          %v946 = vpack.c.b16 %v666, %v658
          %v947 = vpack.c.b16 %v675, %v667
          %v948 = vpack.c.b16 %v676, %v668
          %v949 = vpack.c.b16 %v677, %v669
          %v950 = vpack.c.b16 %v678, %v670
          %v951 = vpack.c.b16 %v679, %v671
          %v952 = vpack.c.b16 %v680, %v672
          %v953 = vpack.c.b16 %v681, %v673
          %v954 = vpack.c.b16 %v682, %v674
          %v955 = vpack.c.b16 %v691, %v683
          %v956 = vpack.c.b16 %v692, %v684
          %v957 = vpack.c.b16 %v693, %v685
          %v958 = vpack.c.b16 %v694, %v686
          %v959 = vpack.c.b16 %v695, %v687
          %v960 = vpack.c.b16 %v696, %v688
          %v961 = vpack.c.b16 %v697, %v689
          %v962 = vpack.c.b16 %v698, %v690
          %v963 = vpack.c.b16 %v707, %v699
          %v964 = vpack.c.b16 %v708, %v700
          %v965 = vpack.c.b16 %v709, %v701
          %v966 = vpack.c.b16 %v710, %v702
          %v967 = vpack.c.b16 %v711, %v703
          %v968 = vpack.c.b16 %v712, %v704
          %v969 = vpack.c.b16 %v713, %v705
          %v970 = vpack.c.b16 %v714, %v706
          %v971 = vpack.c.b16 %v723, %v715
          %v972 = vpack.c.b16 %v724, %v716
          %v973 = vpack.c.b16 %v725, %v717
          %v974 = vpack.c.b16 %v726, %v718
          %v975 = vpack.c.b16 %v727, %v719
          %v976 = vpack.c.b16 %v728, %v720
          %v977 = vpack.c.b16 %v729, %v721
          %v978 = vpack.c.b16 %v730, %v722
          %v979 = vpack.c.b16 %v739, %v731
          %v980 = vpack.c.b16 %v740, %v732
          %v981 = vpack.c.b16 %v741, %v733
          %v982 = vpack.c.b16 %v742, %v734
          %v983 = vpack.c.b16 %v743, %v735
          %v984 = vpack.c.b16 %v744, %v736
          %v985 = vpack.c.b16 %v745, %v737
          %v986 = vpack.c.b16 %v746, %v738
          %v987 = vpack.c.b16 %v755, %v747
          %v988 = vpack.c.b16 %v756, %v748
          %v989 = vpack.c.b16 %v757, %v749
          %v990 = vpack.c.b16 %v758, %v750
          %v991 = vpack.c.b16 %v759, %v751
          %v992 = vpack.c.b16 %v760, %v752
          %v993 = vpack.c.b16 %v761, %v753
          %v994 = vpack.c.b16 %v762, %v754
          %v995 = vpack.c.b16 %v771, %v763
          %v996 = vpack.c.b16 %v772, %v764
          %v997 = vpack.c.b16 %v773, %v765
          %v998 = vpack.c.b16 %v774, %v766
          %v999 = vpack.c.b16 %v775, %v767
          %v1000 = vpack.c.b16 %v776, %v768
          %v1001 = vpack.c.b16 %v777, %v769
          %v1002 = vpack.c.b16 %v778, %v770
          %v1003 = vpack.c.b16 %v787, %v779
          %v1004 = vpack.c.b16 %v788, %v780
          %v1005 = vpack.c.b16 %v789, %v781
          %v1006 = vpack.c.b16 %v790, %v782
          %v1007 = vpack.c.b16 %v791, %v783
          %v1008 = vpack.c.b16 %v792, %v784
          %v1009 = vpack.c.b16 %v793, %v785
          %v1010 = vpack.c.b16 %v794, %v786
          %v1011 = vpack.c.b16 %v803, %v795
          %v1012 = vpack.c.b16 %v804, %v796
          %v1013 = vpack.c.b16 %v805, %v797
          %v1014 = vpack.c.b16 %v806, %v798
          %v1015 = vpack.c.b16 %v807, %v799
          %v1016 = vpack.c.b16 %v808, %v800
          %v1017 = vpack.c.b16 %v809, %v801
          %v1018 = vpack.c.b16 %v810, %v802
          %v1019 = vpack.c.b16 %v819, %v811
          %v1020 = vpack.c.b16 %v820, %v812
          %v1021 = vpack.c.b16 %v821, %v813
          %v1022 = vpack.c.b16 %v822, %v814
          %v1023 = vpack.c.b16 %v823, %v815
          %v1024 = vpack.c.b16 %v824, %v816
          %v1025 = vpack.c.b16 %v825, %v817
          %v1026 = vpack.c.b16 %v826, %v818
          %v1027 = vpack.c.b16 %v835, %v827
          %v1028 = vpack.c.b16 %v836, %v828
          %v1029 = vpack.c.b16 %v837, %v829
          %v1030 = vpack.c.b16 %v838, %v830
          %v1031 = vpack.c.b16 %v839, %v831
          %v1032 = vpack.c.b16 %v840, %v832
          %v1033 = vpack.c.b16 %v841, %v833
          %v1034 = vpack.c.b16 %v842, %v834
          %v1035 = vpack.c.b16 %v851, %v843
          %v1036 = vpack.c.b16 %v852, %v844
          %v1037 = vpack.c.b16 %v853, %v845
          %v1038 = vpack.c.b16 %v854, %v846
          %v1039 = vpack.c.b16 %v855, %v847
          %v1040 = vpack.c.b16 %v856, %v848
          %v1041 = vpack.c.b16 %v857, %v849
          %v1042 = vpack.c.b16 %v858, %v850
          %v1043 = vpack.c.b16 %v867, %v859
          %v1044 = vpack.c.b16 %v868, %v860
          %v1045 = vpack.c.b16 %v869, %v861
          %v1046 = vpack.c.b16 %v870, %v862
          %v1047 = vpack.c.b16 %v871, %v863
          %v1048 = vpack.c.b16 %v872, %v864
          %v1049 = vpack.c.b16 %v873, %v865
          %v1050 = vpack.c.b16 %v874, %v866
          %v1051 = vpack.c.b16 %v883, %v875
          %v1052 = vpack.c.b16 %v884, %v876
          %v1053 = vpack.c.b16 %v885, %v877
          %v1054 = vpack.c.b16 %v886, %v878
          %v1055 = vpack.c.b16 %v887, %v879
          %v1056 = vpack.c.b16 %v888, %v880
          %v1057 = vpack.c.b16 %v889, %v881
          %v1058 = vpack.c.b16 %v890, %v882
          %v1059 = vpack.c.b16 %v899, %v891
          %v1060 = vpack.c.b16 %v900, %v892
          %v1061 = vpack.c.b16 %v901, %v893
          %v1062 = vpack.c.b16 %v902, %v894
          %v1063 = vpack.c.b16 %v903, %v895
          %v1064 = vpack.c.b16 %v904, %v896
          %v1065 = vpack.c.b16 %v905, %v897
          %v1066 = vpack.c.b16 %v906, %v898
          %v1067 = vpack.c.b16 %v915, %v907
          %v1068 = vpack.c.b16 %v916, %v908
          %v1069 = vpack.c.b16 %v917, %v909
          %v1070 = vpack.c.b16 %v918, %v910
          %v1071 = vpack.c.b16 %v919, %v911
          %v1072 = vpack.c.b16 %v920, %v912
          %v1073 = vpack.c.b16 %v921, %v913
          %v1074 = vpack.c.b16 %v922, %v914
          %v1075 = vpack.c.b16 %v931, %v923
          %v1076 = vpack.c.b16 %v932, %v924
          %v1077 = vpack.c.b16 %v933, %v925
          %v1078 = vpack.c.b16 %v934, %v926
          %v1079 = vpack.c.b16 %v935, %v927
          %v1080 = vpack.c.b16 %v936, %v928
          %v1081 = vpack.c.b16 %v937, %v929
          %v1082 = vpack.c.b16 %v938, %v930
          %vm1227 = vcmask 261120
          %v1229 = vsel %vm1227, %v504, 0
          %1231 = vmatpush.bf16.msra.mxu0 %v995
          %1232 = vmatpush.bf16.msra.mxu0 %v987
          %1233 = vmatpush.bf16.msra.mxu0 %v979
          %1234 = vmatpush.bf16.msra.mxu0 %v971
          %1235 = vmatpush.bf16.msra.mxu0 %v963
          %1236 = vmatpush.bf16.msra.mxu0 %v955
          %1237 = vmatpush.bf16.msra.mxu0 %v947
          %1238 = vmatpush.bf16.msra.mxu0 %v939
          %1239 = vmatmul.bf16.gmra.mxu0 %v502
          %v1240 = vpop.f32.mrf.mxu0
          %v1241 = vadd.f32 0.0, %v1240
          %v1242 = vpop.f32.mrf.mxu0
          %v1243 = vadd.f32 0.0, %v1242
          %1244 = vdwg.mxu0
          %1245 = vmatpush.bf16.msra.mxu0 %v1059
          %1246 = vmatpush.bf16.msra.mxu0 %v1051
          %1247 = vmatpush.bf16.msra.mxu0 %v1043
          %1248 = vmatpush.bf16.msra.mxu0 %v1035
          %1249 = vmatpush.bf16.msra.mxu0 %v1027
          %1250 = vmatpush.bf16.msra.mxu0 %v1019
          %1251 = vmatpush.bf16.msra.mxu0 %v1011
          %1252 = vmatpush.bf16.msra.mxu0 %v1003
          %1253 = vmatmul.bf16.gmra.mxu0 %v503
          %v1254 = vpop.f32.mrf.mxu0
          %v1255 = vadd.f32 %v1241, %v1254
          %v1256 = vpop.f32.mrf.mxu0
          %v1257 = vadd.f32 %v1243, %v1256
          %1258 = vdwg.mxu0
          %1259 = vmatpush.bf16.msra.mxu0 0
          %1260 = vmatpush.bf16.msra.mxu0 0
          %1261 = vmatpush.bf16.msra.mxu0 0
          %1262 = vmatpush.bf16.msra.mxu0 0
          %1263 = vmatpush.bf16.msra.mxu0 0
          %1264 = vmatpush.bf16.msra.mxu0 0
          %1265 = vmatpush.bf16.msra.mxu0 %v1075
          %1266 = vmatpush.bf16.msra.mxu0 %v1067
          %1267 = vmatmul.bf16.gmra.mxu0 %v1229
          %v1268 = vpop.f32.mrf.mxu0
          %v1269 = vadd.f32 %v1255, %v1268
          %v1270 = vpop.f32.mrf.mxu0
          %v1271 = vadd.f32 %v1257, %v1270
          %1272 = vdwg.mxu0
          %1273 = vmatpush.bf16.msra.mxu0 %v996
          %1274 = vmatpush.bf16.msra.mxu0 %v988
          %1275 = vmatpush.bf16.msra.mxu0 %v980
          %1276 = vmatpush.bf16.msra.mxu0 %v972
          %1277 = vmatpush.bf16.msra.mxu0 %v964
          %1278 = vmatpush.bf16.msra.mxu0 %v956
          %1279 = vmatpush.bf16.msra.mxu0 %v948
          %1280 = vmatpush.bf16.msra.mxu0 %v940
          %1281 = vmatmul.bf16.gmra.mxu0 %v502
          %v1282 = vpop.f32.mrf.mxu0
          %v1283 = vadd.f32 0.0, %v1282
          %v1284 = vpop.f32.mrf.mxu0
          %v1285 = vadd.f32 0.0, %v1284
          %1286 = vdwg.mxu0
          %1287 = vmatpush.bf16.msra.mxu0 %v1060
          %1288 = vmatpush.bf16.msra.mxu0 %v1052
          %1289 = vmatpush.bf16.msra.mxu0 %v1044
          %1290 = vmatpush.bf16.msra.mxu0 %v1036
          %1291 = vmatpush.bf16.msra.mxu0 %v1028
          %1292 = vmatpush.bf16.msra.mxu0 %v1020
          %1293 = vmatpush.bf16.msra.mxu0 %v1012
          %1294 = vmatpush.bf16.msra.mxu0 %v1004
          %1295 = vmatmul.bf16.gmra.mxu0 %v503
          %v1296 = vpop.f32.mrf.mxu0
          %v1297 = vadd.f32 %v1283, %v1296
          %v1298 = vpop.f32.mrf.mxu0
          %v1299 = vadd.f32 %v1285, %v1298
          %1300 = vdwg.mxu0
          %1301 = vmatpush.bf16.msra.mxu0 0
          %1302 = vmatpush.bf16.msra.mxu0 0
          %1303 = vmatpush.bf16.msra.mxu0 0
          %1304 = vmatpush.bf16.msra.mxu0 0
          %1305 = vmatpush.bf16.msra.mxu0 0
          %1306 = vmatpush.bf16.msra.mxu0 0
          %1307 = vmatpush.bf16.msra.mxu0 %v1076
          %1308 = vmatpush.bf16.msra.mxu0 %v1068
          %1309 = vmatmul.bf16.gmra.mxu0 %v1229
          %v1310 = vpop.f32.mrf.mxu0
          %v1311 = vadd.f32 %v1297, %v1310
          %v1312 = vpop.f32.mrf.mxu0
          %v1313 = vadd.f32 %v1299, %v1312
          %1314 = vdwg.mxu0
          %1315 = vmatpush.bf16.msra.mxu0 %v997
          %1316 = vmatpush.bf16.msra.mxu0 %v989
          %1317 = vmatpush.bf16.msra.mxu0 %v981
          %1318 = vmatpush.bf16.msra.mxu0 %v973
          %1319 = vmatpush.bf16.msra.mxu0 %v965
          %1320 = vmatpush.bf16.msra.mxu0 %v957
          %1321 = vmatpush.bf16.msra.mxu0 %v949
          %1322 = vmatpush.bf16.msra.mxu0 %v941
          %1323 = vmatmul.bf16.gmra.mxu0 %v502
          %v1324 = vpop.f32.mrf.mxu0
          %v1325 = vadd.f32 0.0, %v1324
          %v1326 = vpop.f32.mrf.mxu0
          %v1327 = vadd.f32 0.0, %v1326
          %1328 = vdwg.mxu0
          %1329 = vmatpush.bf16.msra.mxu0 %v1061
          %1330 = vmatpush.bf16.msra.mxu0 %v1053
          %1331 = vmatpush.bf16.msra.mxu0 %v1045
          %1332 = vmatpush.bf16.msra.mxu0 %v1037
          %1333 = vmatpush.bf16.msra.mxu0 %v1029
          %1334 = vmatpush.bf16.msra.mxu0 %v1021
          %1335 = vmatpush.bf16.msra.mxu0 %v1013
          %1336 = vmatpush.bf16.msra.mxu0 %v1005
          %1337 = vmatmul.bf16.gmra.mxu0 %v503
          %v1338 = vpop.f32.mrf.mxu0
          %v1339 = vadd.f32 %v1325, %v1338
          %v1340 = vpop.f32.mrf.mxu0
          %v1341 = vadd.f32 %v1327, %v1340
          %1342 = vdwg.mxu0
          %1343 = vmatpush.bf16.msra.mxu0 0
          %1344 = vmatpush.bf16.msra.mxu0 0
          %1345 = vmatpush.bf16.msra.mxu0 0
          %1346 = vmatpush.bf16.msra.mxu0 0
          %1347 = vmatpush.bf16.msra.mxu0 0
          %1348 = vmatpush.bf16.msra.mxu0 0
          %1349 = vmatpush.bf16.msra.mxu0 %v1077
          %1350 = vmatpush.bf16.msra.mxu0 %v1069
          %1351 = vmatmul.bf16.gmra.mxu0 %v1229
          %v1352 = vpop.f32.mrf.mxu0
          %v1353 = vadd.f32 %v1339, %v1352
          %v1354 = vpop.f32.mrf.mxu0
          %v1355 = vadd.f32 %v1341, %v1354
          %1356 = vdwg.mxu0
          %1357 = vmatpush.bf16.msra.mxu0 %v998
          %1358 = vmatpush.bf16.msra.mxu0 %v990
          %1359 = vmatpush.bf16.msra.mxu0 %v982
          %1360 = vmatpush.bf16.msra.mxu0 %v974
          %1361 = vmatpush.bf16.msra.mxu0 %v966
          %1362 = vmatpush.bf16.msra.mxu0 %v958
          %1363 = vmatpush.bf16.msra.mxu0 %v950
          %1364 = vmatpush.bf16.msra.mxu0 %v942
          %1365 = vmatmul.bf16.gmra.mxu0 %v502
          %v1366 = vpop.f32.mrf.mxu0
          %v1367 = vadd.f32 0.0, %v1366
          %v1368 = vpop.f32.mrf.mxu0
          %v1369 = vadd.f32 0.0, %v1368
          %1370 = vdwg.mxu0
          %1371 = vmatpush.bf16.msra.mxu0 %v1062
          %1372 = vmatpush.bf16.msra.mxu0 %v1054
          %1373 = vmatpush.bf16.msra.mxu0 %v1046
          %1374 = vmatpush.bf16.msra.mxu0 %v1038
          %1375 = vmatpush.bf16.msra.mxu0 %v1030
          %1376 = vmatpush.bf16.msra.mxu0 %v1022
          %1377 = vmatpush.bf16.msra.mxu0 %v1014
          %1378 = vmatpush.bf16.msra.mxu0 %v1006
          %1379 = vmatmul.bf16.gmra.mxu0 %v503
          %v1380 = vpop.f32.mrf.mxu0
          %v1381 = vadd.f32 %v1367, %v1380
          %v1382 = vpop.f32.mrf.mxu0
          %v1383 = vadd.f32 %v1369, %v1382
          %1384 = vdwg.mxu0
          %1385 = vmatpush.bf16.msra.mxu0 0
          %1386 = vmatpush.bf16.msra.mxu0 0
          %1387 = vmatpush.bf16.msra.mxu0 0
          %1388 = vmatpush.bf16.msra.mxu0 0
          %1389 = vmatpush.bf16.msra.mxu0 0
          %1390 = vmatpush.bf16.msra.mxu0 0
          %1391 = vmatpush.bf16.msra.mxu0 %v1078
          %1392 = vmatpush.bf16.msra.mxu0 %v1070
          %1393 = vmatmul.bf16.gmra.mxu0 %v1229
          %v1394 = vpop.f32.mrf.mxu0
          %v1395 = vadd.f32 %v1381, %v1394
          %v1396 = vpop.f32.mrf.mxu0
          %v1397 = vadd.f32 %v1383, %v1396
          %1398 = vdwg.mxu0
          %1399 = vmatpush.bf16.msra.mxu0 %v999
          %1400 = vmatpush.bf16.msra.mxu0 %v991
          %1401 = vmatpush.bf16.msra.mxu0 %v983
          %1402 = vmatpush.bf16.msra.mxu0 %v975
          %1403 = vmatpush.bf16.msra.mxu0 %v967
          %1404 = vmatpush.bf16.msra.mxu0 %v959
          %1405 = vmatpush.bf16.msra.mxu0 %v951
          %1406 = vmatpush.bf16.msra.mxu0 %v943
          %1407 = vmatmul.bf16.gmra.mxu0 %v502
          %v1408 = vpop.f32.mrf.mxu0
          %v1409 = vadd.f32 0.0, %v1408
          %v1410 = vpop.f32.mrf.mxu0
          %v1411 = vadd.f32 0.0, %v1410
          %1412 = vdwg.mxu0
          %1413 = vmatpush.bf16.msra.mxu0 %v1063
          %1414 = vmatpush.bf16.msra.mxu0 %v1055
          %1415 = vmatpush.bf16.msra.mxu0 %v1047
          %1416 = vmatpush.bf16.msra.mxu0 %v1039
          %1417 = vmatpush.bf16.msra.mxu0 %v1031
          %1418 = vmatpush.bf16.msra.mxu0 %v1023
          %1419 = vmatpush.bf16.msra.mxu0 %v1015
          %1420 = vmatpush.bf16.msra.mxu0 %v1007
          %1421 = vmatmul.bf16.gmra.mxu0 %v503
          %v1422 = vpop.f32.mrf.mxu0
          %v1423 = vadd.f32 %v1409, %v1422
          %v1424 = vpop.f32.mrf.mxu0
          %v1425 = vadd.f32 %v1411, %v1424
          %1426 = vdwg.mxu0
          %1427 = vmatpush.bf16.msra.mxu0 0
          %1428 = vmatpush.bf16.msra.mxu0 0
          %1429 = vmatpush.bf16.msra.mxu0 0
          %1430 = vmatpush.bf16.msra.mxu0 0
          %1431 = vmatpush.bf16.msra.mxu0 0
          %1432 = vmatpush.bf16.msra.mxu0 0
          %1433 = vmatpush.bf16.msra.mxu0 %v1079
          %1434 = vmatpush.bf16.msra.mxu0 %v1071
          %1435 = vmatmul.bf16.gmra.mxu0 %v1229
          %v1436 = vpop.f32.mrf.mxu0
          %v1437 = vadd.f32 %v1423, %v1436
          %v1438 = vpop.f32.mrf.mxu0
          %v1439 = vadd.f32 %v1425, %v1438
          %1440 = vdwg.mxu0
          %1441 = vmatpush.bf16.msra.mxu0 %v1000
          %1442 = vmatpush.bf16.msra.mxu0 %v992
          %1443 = vmatpush.bf16.msra.mxu0 %v984
          %1444 = vmatpush.bf16.msra.mxu0 %v976
          %1445 = vmatpush.bf16.msra.mxu0 %v968
          %1446 = vmatpush.bf16.msra.mxu0 %v960
          %1447 = vmatpush.bf16.msra.mxu0 %v952
          %1448 = vmatpush.bf16.msra.mxu0 %v944
          %1449 = vmatmul.bf16.gmra.mxu0 %v502
          %v1450 = vpop.f32.mrf.mxu0
          %v1451 = vadd.f32 0.0, %v1450
          %v1452 = vpop.f32.mrf.mxu0
          %v1453 = vadd.f32 0.0, %v1452
          %1454 = vdwg.mxu0
          %1455 = vmatpush.bf16.msra.mxu0 %v1064
          %1456 = vmatpush.bf16.msra.mxu0 %v1056
          %1457 = vmatpush.bf16.msra.mxu0 %v1048
          %1458 = vmatpush.bf16.msra.mxu0 %v1040
          %1459 = vmatpush.bf16.msra.mxu0 %v1032
          %1460 = vmatpush.bf16.msra.mxu0 %v1024
          %1461 = vmatpush.bf16.msra.mxu0 %v1016
          %1462 = vmatpush.bf16.msra.mxu0 %v1008
          %1463 = vmatmul.bf16.gmra.mxu0 %v503
          %v1464 = vpop.f32.mrf.mxu0
          %v1465 = vadd.f32 %v1451, %v1464
          %v1466 = vpop.f32.mrf.mxu0
          %v1467 = vadd.f32 %v1453, %v1466
          %1468 = vdwg.mxu0
          %1469 = vmatpush.bf16.msra.mxu0 0
          %1470 = vmatpush.bf16.msra.mxu0 0
          %1471 = vmatpush.bf16.msra.mxu0 0
          %1472 = vmatpush.bf16.msra.mxu0 0
          %1473 = vmatpush.bf16.msra.mxu0 0
          %1474 = vmatpush.bf16.msra.mxu0 0
          %1475 = vmatpush.bf16.msra.mxu0 %v1080
          %1476 = vmatpush.bf16.msra.mxu0 %v1072
          %1477 = vmatmul.bf16.gmra.mxu0 %v1229
          %v1478 = vpop.f32.mrf.mxu0
          %v1479 = vadd.f32 %v1465, %v1478
          %v1480 = vpop.f32.mrf.mxu0
          %v1481 = vadd.f32 %v1467, %v1480
          %1482 = vdwg.mxu0
          %1483 = vmatpush.bf16.msra.mxu0 %v1001
          %1484 = vmatpush.bf16.msra.mxu0 %v993
          %1485 = vmatpush.bf16.msra.mxu0 %v985
          %1486 = vmatpush.bf16.msra.mxu0 %v977
          %1487 = vmatpush.bf16.msra.mxu0 %v969
          %1488 = vmatpush.bf16.msra.mxu0 %v961
          %1489 = vmatpush.bf16.msra.mxu0 %v953
          %1490 = vmatpush.bf16.msra.mxu0 %v945
          %1491 = vmatmul.bf16.gmra.mxu0 %v502
          %v1492 = vpop.f32.mrf.mxu0
          %v1493 = vadd.f32 0.0, %v1492
          %v1494 = vpop.f32.mrf.mxu0
          %v1495 = vadd.f32 0.0, %v1494
          %1496 = vdwg.mxu0
          %1497 = vmatpush.bf16.msra.mxu0 %v1065
          %1498 = vmatpush.bf16.msra.mxu0 %v1057
          %1499 = vmatpush.bf16.msra.mxu0 %v1049
          %1500 = vmatpush.bf16.msra.mxu0 %v1041
          %1501 = vmatpush.bf16.msra.mxu0 %v1033
          %1502 = vmatpush.bf16.msra.mxu0 %v1025
          %1503 = vmatpush.bf16.msra.mxu0 %v1017
          %1504 = vmatpush.bf16.msra.mxu0 %v1009
          %1505 = vmatmul.bf16.gmra.mxu0 %v503
          %v1506 = vpop.f32.mrf.mxu0
          %v1507 = vadd.f32 %v1493, %v1506
          %v1508 = vpop.f32.mrf.mxu0
          %v1509 = vadd.f32 %v1495, %v1508
          %1510 = vdwg.mxu0
          %1511 = vmatpush.bf16.msra.mxu0 0
          %1512 = vmatpush.bf16.msra.mxu0 0
          %1513 = vmatpush.bf16.msra.mxu0 0
          %1514 = vmatpush.bf16.msra.mxu0 0
          %1515 = vmatpush.bf16.msra.mxu0 0
          %1516 = vmatpush.bf16.msra.mxu0 0
          %1517 = vmatpush.bf16.msra.mxu0 %v1081
          %1518 = vmatpush.bf16.msra.mxu0 %v1073
          %1519 = vmatmul.bf16.gmra.mxu0 %v1229
          %v1520 = vpop.f32.mrf.mxu0
          %v1521 = vadd.f32 %v1507, %v1520
          %v1522 = vpop.f32.mrf.mxu0
          %v1523 = vadd.f32 %v1509, %v1522
          %1524 = vdwg.mxu0
          %1525 = vmatpush.bf16.msra.mxu0 %v1002
          %1526 = vmatpush.bf16.msra.mxu0 %v994
          %1527 = vmatpush.bf16.msra.mxu0 %v986
          %1528 = vmatpush.bf16.msra.mxu0 %v978
          %1529 = vmatpush.bf16.msra.mxu0 %v970
          %1530 = vmatpush.bf16.msra.mxu0 %v962
          %1531 = vmatpush.bf16.msra.mxu0 %v954
          %1532 = vmatpush.bf16.msra.mxu0 %v946
          %1533 = vmatmul.bf16.gmra.mxu0 %v502
          %v1534 = vpop.f32.mrf.mxu0
          %v1535 = vadd.f32 0.0, %v1534
          %v1536 = vpop.f32.mrf.mxu0
          %v1537 = vadd.f32 0.0, %v1536
          %1538 = vdwg.mxu0
          %1539 = vmatpush.bf16.msra.mxu0 %v1066
          %1540 = vmatpush.bf16.msra.mxu0 %v1058
          %1541 = vmatpush.bf16.msra.mxu0 %v1050
          %1542 = vmatpush.bf16.msra.mxu0 %v1042
          %1543 = vmatpush.bf16.msra.mxu0 %v1034
          %1544 = vmatpush.bf16.msra.mxu0 %v1026
          %1545 = vmatpush.bf16.msra.mxu0 %v1018
          %1546 = vmatpush.bf16.msra.mxu0 %v1010
          %1547 = vmatmul.bf16.gmra.mxu0 %v503
          %v1548 = vpop.f32.mrf.mxu0
          %v1549 = vadd.f32 %v1535, %v1548
          %v1550 = vpop.f32.mrf.mxu0
          %v1551 = vadd.f32 %v1537, %v1550
          %1552 = vdwg.mxu0
          %1553 = vmatpush.bf16.msra.mxu0 0
          %1554 = vmatpush.bf16.msra.mxu0 0
          %1555 = vmatpush.bf16.msra.mxu0 0
          %1556 = vmatpush.bf16.msra.mxu0 0
          %1557 = vmatpush.bf16.msra.mxu0 0
          %1558 = vmatpush.bf16.msra.mxu0 0
          %1559 = vmatpush.bf16.msra.mxu0 %v1082
          %1560 = vmatpush.bf16.msra.mxu0 %v1074
          %1561 = vmatmul.bf16.gmra.mxu0 %v1229
          %v1562 = vpop.f32.mrf.mxu0
          %v1563 = vadd.f32 %v1549, %v1562
          %v1564 = vpop.f32.mrf.mxu0
          %v1565 = vadd.f32 %v1551, %v1564
          %1566 = vdwg.mxu0
          %v1567 = vpack.c.bf16 %v1271, %v1269
          %v1568 = vpack.c.bf16 %v1313, %v1311
          %v1569 = vpack.c.bf16 %v1355, %v1353
          %v1570 = vpack.c.bf16 %v1397, %v1395
          %v1571 = vpack.c.bf16 %v1439, %v1437
          %v1572 = vpack.c.bf16 %v1481, %v1479
          %v1573 = vpack.c.bf16 %v1523, %v1521
          %v1574 = vpack.c.bf16 %v1565, %v1563
          %v1575 = vld [vmem:[#allocation8] sm:$0xf]
          %v1576 = vld [vmem:[#allocation8 + $0x4] sm:$0xf]
          %v1577 = vld [vmem:[#allocation8 + $0x8] sm:$0xf]
          %v1578 = vld [vmem:[#allocation8 + $0xc] sm:$0xf]
          %v1579 = vld [vmem:[#allocation8 + $0x10] sm:$0xf]
          %v1580 = vld [vmem:[#allocation8 + $0x14] sm:$0xf]
          %v1581 = vld [vmem:[#allocation8 + $0x18] sm:$0xf]
          %v1582 = vld [vmem:[#allocation8 + $0x1c] sm:$0xf]
          %v1583 = vld [vmem:[#allocation8 + $0x20] sm:$0xf]
          %v1584 = vld [vmem:[#allocation8 + $0x24] sm:$0xf]
          %v1585 = vld [vmem:[#allocation8 + $0x28] sm:$0xf]
          %v1586 = vld [vmem:[#allocation8 + $0x2c] sm:$0xf]
          %v1587 = vld [vmem:[#allocation8 + $0x30] sm:$0xf]
          %v1588 = vld [vmem:[#allocation8 + $0x34] sm:$0xf]
          %v1589 = vld [vmem:[#allocation8 + $0x38] sm:$0xf]
          %v1590 = vld [vmem:[#allocation8 + $0x3c] sm:$0xf]
          %v1591 = vld [vmem:[#allocation8 + $0x40] sm:$0xf]
          %v1592 = vld [vmem:[#allocation8 + $0x44] sm:$0xf]
          %v1593 = vld [vmem:[#allocation8 + $0x48] sm:$0xf]
          %v1594 = vld [vmem:[#allocation8 + $0x4c] sm:$0xf]
          %v1595 = vld [vmem:[#allocation8 + $0x50] sm:$0xf]
          %v1596 = vld [vmem:[#allocation8 + $0x54] sm:$0xf]
          %v1597 = vld [vmem:[#allocation8 + $0x58] sm:$0xf]
          %v1598 = vld [vmem:[#allocation8 + $0x5c] sm:$0xf]
          %v1599 = vld [vmem:[#allocation8 + $0x60] sm:$0xf]
          %v1600 = vld [vmem:[#allocation8 + $0x64] sm:$0xf]
          %v1601 = vld [vmem:[#allocation8 + $0x68] sm:$0xf]
          %v1602 = vld [vmem:[#allocation8 + $0x6c] sm:$0xf]
          %v1603 = vld [vmem:[#allocation8 + $0x70] sm:$0xf]
          %v1604 = vld [vmem:[#allocation8 + $0x74] sm:$0xf]
          %v1605 = vld [vmem:[#allocation8 + $0x78] sm:$0xf]
          %v1606 = vld [vmem:[#allocation8 + $0x7c] sm:$0xf]
          %v1607 = vld [vmem:[#allocation8 + $0x80] sm:$0xf]
          %v1608 = vld [vmem:[#allocation8 + $0x84] sm:$0xf]
          %v1609 = vld [vmem:[#allocation8 + $0x88] sm:$0xf]
          %v1610 = vld [vmem:[#allocation8 + $0x8c] sm:$0xf]
          %v1611 = vld [vmem:[#allocation8 + $0x90] sm:$0xf]
          %v1612 = vld [vmem:[#allocation8 + $0x94] sm:$0xf]
          %v1613 = vld [vmem:[#allocation8 + $0x98] sm:$0xf]
          %v1614 = vld [vmem:[#allocation8 + $0x9c] sm:$0xf]
          %v1615 = vld [vmem:[#allocation8 + $0xa0] sm:$0xf]
          %v1616 = vld [vmem:[#allocation8 + $0xa4] sm:$0xf]
          %v1617 = vld [vmem:[#allocation8 + $0xa8] sm:$0xf]
          %v1618 = vld [vmem:[#allocation8 + $0xac] sm:$0xf]
          %v1619 = vld [vmem:[#allocation8 + $0xb0] sm:$0xf]
          %v1620 = vld [vmem:[#allocation8 + $0xb4] sm:$0xf]
          %v1621 = vld [vmem:[#allocation8 + $0xb8] sm:$0xf]
          %v1622 = vld [vmem:[#allocation8 + $0xbc] sm:$0xf]
          %v1623 = vld [vmem:[#allocation8 + $0xc0] sm:$0xf]
          %v1624 = vld [vmem:[#allocation8 + $0xc4] sm:$0xf]
          %v1625 = vld [vmem:[#allocation8 + $0xc8] sm:$0xf]
          %v1626 = vld [vmem:[#allocation8 + $0xcc] sm:$0xf]
          %v1627 = vld [vmem:[#allocation8 + $0xd0] sm:$0xf]
          %v1628 = vld [vmem:[#allocation8 + $0xd4] sm:$0xf]
          %v1629 = vld [vmem:[#allocation8 + $0xd8] sm:$0xf]
          %v1630 = vld [vmem:[#allocation8 + $0xdc] sm:$0xf]
          %v1631 = vld [vmem:[#allocation8 + $0xe0] sm:$0xf]
          %v1632 = vld [vmem:[#allocation8 + $0xe4] sm:$0xf]
          %v1633 = vld [vmem:[#allocation8 + $0xe8] sm:$0xf]
          %v1634 = vld [vmem:[#allocation8 + $0xec] sm:$0xf]
          %v1635 = vld [vmem:[#allocation8 + $0xf0] sm:$0xf]
          %v1636 = vld [vmem:[#allocation8 + $0xf4] sm:$0xf]
          %v1637 = vld [vmem:[#allocation8 + $0xf8] sm:$0xf]
          %v1638 = vld [vmem:[#allocation8 + $0xfc] sm:$0xf]
          %v1639 = vld [vmem:[#allocation8 + $0x100] sm:$0xf]
          %v1640 = vld [vmem:[#allocation8 + $0x104] sm:$0xf]
          %v1641 = vld [vmem:[#allocation8 + $0x108] sm:$0xf]
          %v1642 = vld [vmem:[#allocation8 + $0x10c] sm:$0xf]
          %v1643 = vld [vmem:[#allocation8 + $0x110] sm:$0xf]
          %v1644 = vld [vmem:[#allocation8 + $0x114] sm:$0xf]
          %v1645 = vld [vmem:[#allocation8 + $0x118] sm:$0xf]
          %v1646 = vld [vmem:[#allocation8 + $0x11c] sm:$0xf]
          %v1647 = vld [vmem:[#allocation8 + $0x120] sm:$0xf]
          %v1648 = vld [vmem:[#allocation8 + $0x124] sm:$0xf]
          %v1649 = vld [vmem:[#allocation8 + $0x128] sm:$0xf]
          %v1650 = vld [vmem:[#allocation8 + $0x12c] sm:$0xf]
          %v1651 = vld [vmem:[#allocation8 + $0x130] sm:$0xf]
          %v1652 = vld [vmem:[#allocation8 + $0x134] sm:$0xf]
          %v1653 = vld [vmem:[#allocation8 + $0x138] sm:$0xf]
          %v1654 = vld [vmem:[#allocation8 + $0x13c] sm:$0xf]
          %v1655 = vld [vmem:[#allocation8 + $0x140] sm:$0xf]
          %v1656 = vld [vmem:[#allocation8 + $0x144] sm:$0xf]
          %v1657 = vld [vmem:[#allocation8 + $0x148] sm:$0xf]
          %v1658 = vld [vmem:[#allocation8 + $0x14c] sm:$0xf]
          %v1659 = vld [vmem:[#allocation8 + $0x150] sm:$0xf]
          %v1660 = vld [vmem:[#allocation8 + $0x154] sm:$0xf]
          %v1661 = vld [vmem:[#allocation8 + $0x158] sm:$0xf]
          %v1662 = vld [vmem:[#allocation8 + $0x15c] sm:$0xf]
          %v1663 = vld [vmem:[#allocation8 + $0x160] sm:$0xf]
          %v1664 = vld [vmem:[#allocation8 + $0x164] sm:$0xf]
          %v1665 = vld [vmem:[#allocation8 + $0x168] sm:$0xf]
          %v1666 = vld [vmem:[#allocation8 + $0x16c] sm:$0xf]
          %v1667 = vld [vmem:[#allocation8 + $0x170] sm:$0xf]
          %v1668 = vld [vmem:[#allocation8 + $0x174] sm:$0xf]
          %v1669 = vld [vmem:[#allocation8 + $0x178] sm:$0xf]
          %v1670 = vld [vmem:[#allocation8 + $0x17c] sm:$0xf]
          %v1671 = vld [vmem:[#allocation8 + $0x180] sm:$0xf]
          %v1672 = vld [vmem:[#allocation8 + $0x184] sm:$0xf]
          %v1673 = vld [vmem:[#allocation8 + $0x188] sm:$0xf]
          %v1674 = vld [vmem:[#allocation8 + $0x18c] sm:$0xf]
          %v1675 = vld [vmem:[#allocation8 + $0x190] sm:$0xf]
          %v1676 = vld [vmem:[#allocation8 + $0x194] sm:$0xf]
          %v1677 = vld [vmem:[#allocation8 + $0x198] sm:$0xf]
          %v1678 = vld [vmem:[#allocation8 + $0x19c] sm:$0xf]
          %v1679 = vld [vmem:[#allocation8 + $0x1a0] sm:$0xf]
          %v1680 = vld [vmem:[#allocation8 + $0x1a4] sm:$0xf]
          %v1681 = vld [vmem:[#allocation8 + $0x1a8] sm:$0xf]
          %v1682 = vld [vmem:[#allocation8 + $0x1ac] sm:$0xf]
          %v1683 = vld [vmem:[#allocation8 + $0x1b0] sm:$0xf]
          %v1684 = vld [vmem:[#allocation8 + $0x1b4] sm:$0xf]
          %v1685 = vld [vmem:[#allocation8 + $0x1b8] sm:$0xf]
          %v1686 = vld [vmem:[#allocation8 + $0x1bc] sm:$0xf]
          %v1687 = vld [vmem:[#allocation8 + $0x1c0] sm:$0xf]
          %v1688 = vld [vmem:[#allocation8 + $0x1c4] sm:$0xf]
          %v1689 = vld [vmem:[#allocation8 + $0x1c8] sm:$0xf]
          %v1690 = vld [vmem:[#allocation8 + $0x1cc] sm:$0xf]
          %v1691 = vld [vmem:[#allocation8 + $0x1d0] sm:$0xf]
          %v1692 = vld [vmem:[#allocation8 + $0x1d4] sm:$0xf]
          %v1693 = vld [vmem:[#allocation8 + $0x1d8] sm:$0xf]
          %v1694 = vld [vmem:[#allocation8 + $0x1dc] sm:$0xf]
          %v1695 = vld [vmem:[#allocation8 + $0x1e0] sm:$0xf]
          %v1696 = vld [vmem:[#allocation8 + $0x1e4] sm:$0xf]
          %v1697 = vld [vmem:[#allocation8 + $0x1e8] sm:$0xf]
          %v1698 = vld [vmem:[#allocation8 + $0x1ec] sm:$0xf]
          %v1699 = vld [vmem:[#allocation8 + $0x1f0] sm:$0xf]
          %v1700 = vld [vmem:[#allocation8 + $0x1f4] sm:$0xf]
          %v1701 = vld [vmem:[#allocation8 + $0x1f8] sm:$0xf]
          %v1702 = vld [vmem:[#allocation8 + $0x1fc] sm:$0xf]
          %v1703 = vld [vmem:[%s3] sm:$0x1]
          %v1705 = vperm.slane %v1703, 0
          %v1835 = vunpack.c.l.b16 %v1575
          %v1836 = vunpack.c.l.b16 %v1576
          %v1837 = vunpack.c.l.b16 %v1577
          %v1838 = vunpack.c.l.b16 %v1578
          %v1839 = vunpack.c.l.b16 %v1579
          %v1840 = vunpack.c.l.b16 %v1580
          %v1841 = vunpack.c.l.b16 %v1581
          %v1842 = vunpack.c.l.b16 %v1582
          %v1843 = vunpack.c.l.b16 %v1583
          %v1844 = vunpack.c.l.b16 %v1584
          %v1845 = vunpack.c.l.b16 %v1585
          %v1846 = vunpack.c.l.b16 %v1586
          %v1847 = vunpack.c.l.b16 %v1587
          %v1848 = vunpack.c.l.b16 %v1588
          %v1849 = vunpack.c.l.b16 %v1589
          %v1850 = vunpack.c.l.b16 %v1590
          %v1851 = vunpack.c.l.b16 %v1591
          %v1852 = vunpack.c.l.b16 %v1592
          %v1853 = vunpack.c.l.b16 %v1593
          %v1854 = vunpack.c.l.b16 %v1594
          %v1855 = vunpack.c.l.b16 %v1595
          %v1856 = vunpack.c.l.b16 %v1596
          %v1857 = vunpack.c.l.b16 %v1597
          %v1858 = vunpack.c.l.b16 %v1598
          %v1859 = vunpack.c.l.b16 %v1599
          %v1860 = vunpack.c.l.b16 %v1600
          %v1861 = vunpack.c.l.b16 %v1601
          %v1862 = vunpack.c.l.b16 %v1602
          %v1863 = vunpack.c.l.b16 %v1603
          %v1864 = vunpack.c.l.b16 %v1604
          %v1865 = vunpack.c.l.b16 %v1605
          %v1866 = vunpack.c.l.b16 %v1606
          %v1867 = vunpack.c.l.b16 %v1607
          %v1868 = vunpack.c.l.b16 %v1608
          %v1869 = vunpack.c.l.b16 %v1609
          %v1870 = vunpack.c.l.b16 %v1610
          %v1871 = vunpack.c.l.b16 %v1611
          %v1872 = vunpack.c.l.b16 %v1612
          %v1873 = vunpack.c.l.b16 %v1613
          %v1874 = vunpack.c.l.b16 %v1614
          %v1875 = vunpack.c.l.b16 %v1615
          %v1876 = vunpack.c.l.b16 %v1616
          %v1877 = vunpack.c.l.b16 %v1617
          %v1878 = vunpack.c.l.b16 %v1618
          %v1879 = vunpack.c.l.b16 %v1619
          %v1880 = vunpack.c.l.b16 %v1620
          %v1881 = vunpack.c.l.b16 %v1621
          %v1882 = vunpack.c.l.b16 %v1622
          %v1883 = vunpack.c.l.b16 %v1623
          %v1884 = vunpack.c.l.b16 %v1624
          %v1885 = vunpack.c.l.b16 %v1625
          %v1886 = vunpack.c.l.b16 %v1626
          %v1887 = vunpack.c.l.b16 %v1627
          %v1888 = vunpack.c.l.b16 %v1628
          %v1889 = vunpack.c.l.b16 %v1629
          %v1890 = vunpack.c.l.b16 %v1630
          %v1891 = vunpack.c.l.b16 %v1631
          %v1892 = vunpack.c.l.b16 %v1632
          %v1893 = vunpack.c.l.b16 %v1633
          %v1894 = vunpack.c.l.b16 %v1634
          %v1895 = vunpack.c.l.b16 %v1635
          %v1896 = vunpack.c.l.b16 %v1636
          %v1897 = vunpack.c.l.b16 %v1637
          %v1898 = vunpack.c.l.b16 %v1638
          %v1899 = vunpack.c.l.b16 %v1639
          %v1900 = vunpack.c.l.b16 %v1640
          %v1901 = vunpack.c.l.b16 %v1641
          %v1902 = vunpack.c.l.b16 %v1642
          %v1903 = vunpack.c.l.b16 %v1643
          %v1904 = vunpack.c.l.b16 %v1644
          %v1905 = vunpack.c.l.b16 %v1645
          %v1906 = vunpack.c.l.b16 %v1646
          %v1907 = vunpack.c.l.b16 %v1647
          %v1908 = vunpack.c.l.b16 %v1648
          %v1909 = vunpack.c.l.b16 %v1649
          %v1910 = vunpack.c.l.b16 %v1650
          %v1911 = vunpack.c.l.b16 %v1651
          %v1912 = vunpack.c.l.b16 %v1652
          %v1913 = vunpack.c.l.b16 %v1653
          %v1914 = vunpack.c.l.b16 %v1654
          %v1915 = vunpack.c.l.b16 %v1655
          %v1916 = vunpack.c.l.b16 %v1656
          %v1917 = vunpack.c.l.b16 %v1657
          %v1918 = vunpack.c.l.b16 %v1658
          %v1919 = vunpack.c.l.b16 %v1659
          %v1920 = vunpack.c.l.b16 %v1660
          %v1921 = vunpack.c.l.b16 %v1661
          %v1922 = vunpack.c.l.b16 %v1662
          %v1923 = vunpack.c.l.b16 %v1663
          %v1924 = vunpack.c.l.b16 %v1664
          %v1925 = vunpack.c.l.b16 %v1665
          %v1926 = vunpack.c.l.b16 %v1666
          %v1927 = vunpack.c.l.b16 %v1667
          %v1928 = vunpack.c.l.b16 %v1668
          %v1929 = vunpack.c.l.b16 %v1669
          %v1930 = vunpack.c.l.b16 %v1670
          %v1931 = vunpack.c.l.b16 %v1671
          %v1932 = vunpack.c.l.b16 %v1672
          %v1933 = vunpack.c.l.b16 %v1673
          %v1934 = vunpack.c.l.b16 %v1674
          %v1935 = vunpack.c.l.b16 %v1675
          %v1936 = vunpack.c.l.b16 %v1676
          %v1937 = vunpack.c.l.b16 %v1677
          %v1938 = vunpack.c.l.b16 %v1678
          %v1939 = vunpack.c.l.b16 %v1679
          %v1940 = vunpack.c.l.b16 %v1680
          %v1941 = vunpack.c.l.b16 %v1681
          %v1942 = vunpack.c.l.b16 %v1682
          %v1943 = vunpack.c.l.b16 %v1683
          %v1944 = vunpack.c.l.b16 %v1684
          %v1945 = vunpack.c.l.b16 %v1685
          %v1946 = vunpack.c.l.b16 %v1686
          %v1947 = vunpack.c.l.b16 %v1687
          %v1948 = vunpack.c.l.b16 %v1688
          %v1949 = vunpack.c.l.b16 %v1689
          %v1950 = vunpack.c.l.b16 %v1690
          %v1951 = vunpack.c.l.b16 %v1691
          %v1952 = vunpack.c.l.b16 %v1692
          %v1953 = vunpack.c.l.b16 %v1693
          %v1954 = vunpack.c.l.b16 %v1694
          %v1955 = vunpack.c.l.b16 %v1695
          %v1956 = vunpack.c.l.b16 %v1696
          %v1957 = vunpack.c.l.b16 %v1697
          %v1958 = vunpack.c.l.b16 %v1698
          %v1959 = vunpack.c.l.b16 %v1699
          %v1960 = vunpack.c.l.b16 %v1700
          %v1961 = vunpack.c.l.b16 %v1701
          %v1962 = vunpack.c.l.b16 %v1702
          %v1963 = vpack.c.b16 %v1836, %v1835
          %v1964 = vpack.c.b16 %v1838, %v1837
          %v1965 = vpack.c.b16 %v1840, %v1839
          %v1966 = vpack.c.b16 %v1842, %v1841
          %v1967 = vpack.c.b16 %v1844, %v1843
          %v1968 = vpack.c.b16 %v1846, %v1845
          %v1969 = vpack.c.b16 %v1848, %v1847
          %v1970 = vpack.c.b16 %v1850, %v1849
          %v1971 = vpack.c.b16 %v1852, %v1851
          %v1972 = vpack.c.b16 %v1854, %v1853
          %v1973 = vpack.c.b16 %v1856, %v1855
          %v1974 = vpack.c.b16 %v1858, %v1857
          %v1975 = vpack.c.b16 %v1860, %v1859
          %v1976 = vpack.c.b16 %v1862, %v1861
          %v1977 = vpack.c.b16 %v1864, %v1863
          %v1978 = vpack.c.b16 %v1866, %v1865
          %v1979 = vpack.c.b16 %v1868, %v1867
          %v1980 = vpack.c.b16 %v1870, %v1869
          %v1981 = vpack.c.b16 %v1872, %v1871
          %v1982 = vpack.c.b16 %v1874, %v1873
          %v1983 = vpack.c.b16 %v1876, %v1875
          %v1984 = vpack.c.b16 %v1878, %v1877
          %v1985 = vpack.c.b16 %v1880, %v1879
          %v1986 = vpack.c.b16 %v1882, %v1881
          %v1987 = vpack.c.b16 %v1884, %v1883
          %v1988 = vpack.c.b16 %v1886, %v1885
          %v1989 = vpack.c.b16 %v1888, %v1887
          %v1990 = vpack.c.b16 %v1890, %v1889
          %v1991 = vpack.c.b16 %v1892, %v1891
          %v1992 = vpack.c.b16 %v1894, %v1893
          %v1993 = vpack.c.b16 %v1896, %v1895
          %v1994 = vpack.c.b16 %v1898, %v1897
          %v1995 = vpack.c.b16 %v1900, %v1899
          %v1996 = vpack.c.b16 %v1902, %v1901
          %v1997 = vpack.c.b16 %v1904, %v1903
          %v1998 = vpack.c.b16 %v1906, %v1905
          %v1999 = vpack.c.b16 %v1908, %v1907
          %v2000 = vpack.c.b16 %v1910, %v1909
          %v2001 = vpack.c.b16 %v1912, %v1911
          %v2002 = vpack.c.b16 %v1914, %v1913
          %v2003 = vpack.c.b16 %v1916, %v1915
          %v2004 = vpack.c.b16 %v1918, %v1917
          %v2005 = vpack.c.b16 %v1920, %v1919
          %v2006 = vpack.c.b16 %v1922, %v1921
          %v2007 = vpack.c.b16 %v1924, %v1923
          %v2008 = vpack.c.b16 %v1926, %v1925
          %v2009 = vpack.c.b16 %v1928, %v1927
          %v2010 = vpack.c.b16 %v1930, %v1929
          %v2011 = vpack.c.b16 %v1932, %v1931
          %v2012 = vpack.c.b16 %v1934, %v1933
          %v2013 = vpack.c.b16 %v1936, %v1935
          %v2014 = vpack.c.b16 %v1938, %v1937
          %v2015 = vpack.c.b16 %v1940, %v1939
          %v2016 = vpack.c.b16 %v1942, %v1941
          %v2017 = vpack.c.b16 %v1944, %v1943
          %v2018 = vpack.c.b16 %v1946, %v1945
          %v2019 = vpack.c.b16 %v1948, %v1947
          %v2020 = vpack.c.b16 %v1950, %v1949
          %v2021 = vpack.c.b16 %v1952, %v1951
          %v2022 = vpack.c.b16 %v1954, %v1953
          %v2023 = vpack.c.b16 %v1956, %v1955
          %v2024 = vpack.c.b16 %v1958, %v1957
          %v2025 = vpack.c.b16 %v1960, %v1959
          %v2026 = vpack.c.b16 %v1962, %v1961
          %2091 = vmatpush.bf16.msra.mxu0 %v1970
          %2092 = vmatpush.bf16.msra.mxu0 %v1969
          %2093 = vmatpush.bf16.msra.mxu0 %v1968
          %2094 = vmatpush.bf16.msra.mxu0 %v1967
          %2095 = vmatpush.bf16.msra.mxu0 %v1966
          %2096 = vmatpush.bf16.msra.mxu0 %v1965
          %2097 = vmatpush.bf16.msra.mxu0 %v1964
          %2098 = vmatpush.bf16.msra.mxu0 %v1963
          %2099 = vmatmul.bf16.gmra.mxu0 %v1567
          %v2100 = vpop.f32.mrf.mxu0
          %v2101 = vadd.f32 %v1705, %v2100
          %v2102 = vpop.f32.mrf.mxu0
          %v2103 = vadd.f32 %v1705, %v2102
          %2104 = vdwg.mxu0
          %2105 = vmatpush.bf16.msra.mxu0 %v1978
          %2106 = vmatpush.bf16.msra.mxu0 %v1977
          %2107 = vmatpush.bf16.msra.mxu0 %v1976
          %2108 = vmatpush.bf16.msra.mxu0 %v1975
          %2109 = vmatpush.bf16.msra.mxu0 %v1974
          %2110 = vmatpush.bf16.msra.mxu0 %v1973
          %2111 = vmatpush.bf16.msra.mxu0 %v1972
          %2112 = vmatpush.bf16.msra.mxu0 %v1971
          %2113 = vmatmul.bf16.gmra.mxu0 %v1568
          %v2114 = vpop.f32.mrf.mxu0
          %v2115 = vadd.f32 %v2101, %v2114
          %v2116 = vpop.f32.mrf.mxu0
          %v2117 = vadd.f32 %v2103, %v2116
          %2118 = vdwg.mxu0
          %2119 = vmatpush.bf16.msra.mxu0 %v1986
          %2120 = vmatpush.bf16.msra.mxu0 %v1985
          %2121 = vmatpush.bf16.msra.mxu0 %v1984
          %2122 = vmatpush.bf16.msra.mxu0 %v1983
          %2123 = vmatpush.bf16.msra.mxu0 %v1982
          %2124 = vmatpush.bf16.msra.mxu0 %v1981
          %2125 = vmatpush.bf16.msra.mxu0 %v1980
          %2126 = vmatpush.bf16.msra.mxu0 %v1979
          %2127 = vmatmul.bf16.gmra.mxu0 %v1569
          %v2128 = vpop.f32.mrf.mxu0
          %v2129 = vadd.f32 %v2115, %v2128
          %v2130 = vpop.f32.mrf.mxu0
          %v2131 = vadd.f32 %v2117, %v2130
          %2132 = vdwg.mxu0
          %2133 = vmatpush.bf16.msra.mxu0 %v1994
          %2134 = vmatpush.bf16.msra.mxu0 %v1993
          %2135 = vmatpush.bf16.msra.mxu0 %v1992
          %2136 = vmatpush.bf16.msra.mxu0 %v1991
          %2137 = vmatpush.bf16.msra.mxu0 %v1990
          %2138 = vmatpush.bf16.msra.mxu0 %v1989
          %2139 = vmatpush.bf16.msra.mxu0 %v1988
          %2140 = vmatpush.bf16.msra.mxu0 %v1987
          %2141 = vmatmul.bf16.gmra.mxu0 %v1570
          %v2142 = vpop.f32.mrf.mxu0
          %v2143 = vadd.f32 %v2129, %v2142
          %v2144 = vpop.f32.mrf.mxu0
          %v2145 = vadd.f32 %v2131, %v2144
          %2146 = vdwg.mxu0
          %2147 = vmatpush.bf16.msra.mxu0 %v2002
          %2148 = vmatpush.bf16.msra.mxu0 %v2001
          %2149 = vmatpush.bf16.msra.mxu0 %v2000
          %2150 = vmatpush.bf16.msra.mxu0 %v1999
          %2151 = vmatpush.bf16.msra.mxu0 %v1998
          %2152 = vmatpush.bf16.msra.mxu0 %v1997
          %2153 = vmatpush.bf16.msra.mxu0 %v1996
          %2154 = vmatpush.bf16.msra.mxu0 %v1995
          %2155 = vmatmul.bf16.gmra.mxu0 %v1571
          %v2156 = vpop.f32.mrf.mxu0
          %v2157 = vadd.f32 %v2143, %v2156
          %v2158 = vpop.f32.mrf.mxu0
          %v2159 = vadd.f32 %v2145, %v2158
          %2160 = vdwg.mxu0
          %2161 = vmatpush.bf16.msra.mxu0 %v2010
          %2162 = vmatpush.bf16.msra.mxu0 %v2009
          %2163 = vmatpush.bf16.msra.mxu0 %v2008
          %2164 = vmatpush.bf16.msra.mxu0 %v2007
          %2165 = vmatpush.bf16.msra.mxu0 %v2006
          %2166 = vmatpush.bf16.msra.mxu0 %v2005
          %2167 = vmatpush.bf16.msra.mxu0 %v2004
          %2168 = vmatpush.bf16.msra.mxu0 %v2003
          %2169 = vmatmul.bf16.gmra.mxu0 %v1572
          %v2170 = vpop.f32.mrf.mxu0
          %v2171 = vadd.f32 %v2157, %v2170
          %v2172 = vpop.f32.mrf.mxu0
          %v2173 = vadd.f32 %v2159, %v2172
          %2174 = vdwg.mxu0
          %2175 = vmatpush.bf16.msra.mxu0 %v2018
          %2176 = vmatpush.bf16.msra.mxu0 %v2017
          %2177 = vmatpush.bf16.msra.mxu0 %v2016
          %2178 = vmatpush.bf16.msra.mxu0 %v2015
          %2179 = vmatpush.bf16.msra.mxu0 %v2014
          %2180 = vmatpush.bf16.msra.mxu0 %v2013
          %2181 = vmatpush.bf16.msra.mxu0 %v2012
          %2182 = vmatpush.bf16.msra.mxu0 %v2011
          %2183 = vmatmul.bf16.gmra.mxu0 %v1573
          %v2184 = vpop.f32.mrf.mxu0
          %v2185 = vadd.f32 %v2171, %v2184
          %v2186 = vpop.f32.mrf.mxu0
          %v2187 = vadd.f32 %v2173, %v2186
          %2188 = vdwg.mxu0
          %2189 = vmatpush.bf16.msra.mxu0 %v2026
          %2190 = vmatpush.bf16.msra.mxu0 %v2025
          %2191 = vmatpush.bf16.msra.mxu0 %v2024
          %2192 = vmatpush.bf16.msra.mxu0 %v2023
          %2193 = vmatpush.bf16.msra.mxu0 %v2022
          %2194 = vmatpush.bf16.msra.mxu0 %v2021
          %2195 = vmatpush.bf16.msra.mxu0 %v2020
          %2196 = vmatpush.bf16.msra.mxu0 %v2019
          %2197 = vmatmul.bf16.gmra.mxu0 %v1574
          %v2198 = vpop.f32.mrf.mxu0
          %v2199 = vadd.f32 %v2185, %v2198
          %v2200 = vpop.f32.mrf.mxu0
          %v2201 = vadd.f32 %v2187, %v2200
          %2202 = vdwg.mxu0
          %v2203 = vmul.f32 %v2199, 0.5
          %v2204 = vmul.f32 %v2201, 0.5
          %v2205 = vmul.f32 %v2199, 0.70710677
          %v2206 = vmul.f32 %v2201, 0.70710677
          %v2207 = vand.u32 2147483647, %v2205
          %v2208 = vand.u32 2147483647, %v2206
          %v2209 = vmul.f32 %v2207, 0.3275911
          %v2210 = vmul.f32 %v2208, 0.3275911
          %v2211 = vadd.f32 %v2209, 1.0
          %v2212 = vadd.f32 %v2210, 1.0
          %v2213 = vrcp.pop %v2211
          %v2214 = vrcp.pop %v2212
          %v2215 = vmul.f32 %v2213, 1.0614054
          %v2216 = vmul.f32 %v2214, 1.0614054
          %v2217 = vadd.f32 %v2215, -1.4531521
          %v2218 = vadd.f32 %v2216, -1.4531521
          %v2219 = vmul.f32 %v2217, %v2213
          %v2220 = vmul.f32 %v2218, %v2214
          %v2221 = vadd.f32 %v2219, 1.4214138
          %v2222 = vadd.f32 %v2220, 1.4214138
          %v2223 = vmul.f32 %v2221, %v2213
          %v2224 = vmul.f32 %v2222, %v2214
          %v2225 = vadd.f32 %v2223, -0.28449672
          %v2226 = vadd.f32 %v2224, -0.28449672
          %v2227 = vmul.f32 %v2225, %v2213
          %v2228 = vmul.f32 %v2226, %v2214
          %v2229 = vadd.f32 %v2227, 0.2548296
          %v2230 = vadd.f32 %v2228, 0.2548296
          %v2231 = vmul.f32 %v2229, %v2213
          %v2232 = vmul.f32 %v2230, %v2214
          %v2233 = vsub.f32 0.0, %v2207
          %v2234 = vsub.f32 0.0, %v2208
          %v2235 = vmul.f32 %v2233, %v2207
          %v2236 = vmul.f32 %v2234, %v2208
          %v2237 = vmul.f32 %v2235, 1.442695
          %v2238 = vpow.pop %v2237
          %v2239 = vmul.f32 %v2236, 1.442695
          %v2240 = vpow.pop %v2239
          %v2241 = vmul.f32 %v2231, %v2238
          %v2242 = vmul.f32 %v2232, %v2240
          %v2243 = vsub.f32 1.0, %v2241
          %v2244 = vsub.f32 1.0, %v2242
          %vm2245 = vcmp.ge.f32.partialorder %v2205, 0.0
          %vm2246 = vcmp.ge.f32.partialorder %v2206, 0.0
          %v2247 = vsub.f32 0.0, %v2243
          %v2248 = vsub.f32 0.0, %v2244
          %v2249 = vsel %vm2245, %v2243, %v2247
          %v2250 = vsel %vm2246, %v2244, %v2248
          %v2251 = vadd.f32 %v2249, 1.0
          %v2252 = vadd.f32 %v2250, 1.0
          %v2253 = vmul.f32 %v2203, %v2251
          %v2254 = vmul.f32 %v2204, %v2252
          %v2255 = vpack.c.bf16 %v2253, %v2253
          %v2256 = vpack.c.bf16 %v2254, %v2254
          %2257 = vst [vmem:[#allocation2] sm:$0xf] %v2255
          %2258 = vst [vmem:[#allocation2 + $0x4] sm:$0xf] %v2256
        $region64: #{tpu_custom_call.1} parent=43 // pred_fallthru
          _
        %v2259 = vld [vmem:[#allocation9] sm:$0xf]
        %v2260 = vld [vmem:[#allocation9 + $0x4] sm:$0xf]
        %v2261 = vld [vmem:[#allocation9 + $0x8] sm:$0xf]
        %v2262 = vld [vmem:[#allocation9 + $0xc] sm:$0xf]
        %v2263 = vld [vmem:[#allocation9 + $0x10] sm:$0xf]
        %v2264 = vld [vmem:[#allocation9 + $0x14] sm:$0xf]
        %v2265 = vld [vmem:[#allocation9 + $0x18] sm:$0xf]
        %v2266 = vld [vmem:[#allocation9 + $0x1c] sm:$0xf]
        %v2267 = vld [vmem:[#allocation9 + $0x20] sm:$0xf]
        %v2268 = vld [vmem:[#allocation9 + $0x24] sm:$0xf]
        %v2269 = vld [vmem:[#allocation9 + $0x28] sm:$0xf]
        %v2270 = vld [vmem:[#allocation9 + $0x2c] sm:$0xf]
        %v2271 = vld [vmem:[#allocation9 + $0x30] sm:$0xf]
        %v2272 = vld [vmem:[#allocation9 + $0x34] sm:$0xf]
        %v2273 = vld [vmem:[#allocation9 + $0x38] sm:$0xf]
        %v2274 = vld [vmem:[#allocation9 + $0x3c] sm:$0xf]
        %v2275 = vld [vmem:[%s5] sm:$0x1]
        %v2276 = vld [vmem:[#allocation2] sm:$0xf]
        %v2277 = vld [vmem:[#allocation2 + $0x4] sm:$0xf]
        %v2279 = vperm.slane %v2275, 0
        %v2283 = vunpack.c.l.b16 %v2276
        %v2284 = vunpack.c.l.b16 %v2277
        %v2285 = vpack.c.b16 %v2284, %v2283
        %v2303 = vunpack.c.l.b16 %v2259
        %v2304 = vunpack.c.l.b16 %v2260
        %v2305 = vunpack.c.l.b16 %v2261
        %v2306 = vunpack.c.l.b16 %v2262
        %v2307 = vunpack.c.l.b16 %v2263
        %v2308 = vunpack.c.l.b16 %v2264
        %v2309 = vunpack.c.l.b16 %v2265
        %v2310 = vunpack.c.l.b16 %v2266
        %v2311 = vunpack.c.l.b16 %v2267
        %v2312 = vunpack.c.l.b16 %v2268
        %v2313 = vunpack.c.l.b16 %v2269
        %v2314 = vunpack.c.l.b16 %v2270
        %v2315 = vunpack.c.l.b16 %v2271
        %v2316 = vunpack.c.l.b16 %v2272
        %v2317 = vunpack.c.l.b16 %v2273
        %v2318 = vunpack.c.l.b16 %v2274
        %v2319 = vpack.c.b16 %v2304, %v2303
        %v2320 = vpack.c.b16 %v2306, %v2305
        %v2321 = vpack.c.b16 %v2308, %v2307
        %v2322 = vpack.c.b16 %v2310, %v2309
        %v2323 = vpack.c.b16 %v2312, %v2311
        %v2324 = vpack.c.b16 %v2314, %v2313
        %v2325 = vpack.c.b16 %v2316, %v2315
        %v2326 = vpack.c.b16 %v2318, %v2317
        %2335 = vmatpush.bf16.msra.mxu0 %v2326
        %2336 = vmatpush.bf16.msra.mxu0 %v2325
        %2337 = vmatpush.bf16.msra.mxu0 %v2324
        %2338 = vmatpush.bf16.msra.mxu0 %v2323
        %2339 = vmatpush.bf16.msra.mxu0 %v2322
        %2340 = vmatpush.bf16.msra.mxu0 %v2321
        %2341 = vmatpush.bf16.msra.mxu0 %v2320
        %2342 = vmatpush.bf16.msra.mxu0 %v2319
        %2343 = vmatmul.bf16.gmra.mxu0 %v2285
        %v2344 = vpop.f32.mrf.mxu0
        %v2345 = vadd.f32 %v2279, %v2344
        %v2346 = vpop.f32.mrf.mxu0
        %v2347 = vadd.f32 %v2279, %v2346
        %2348 = vdwg.mxu0
        %2349 = vst [vmem:[%s336] sm:$0xff] %v2345
        %2350 = vst [vmem:[%s336 + $0x8] sm:$0xff] %v2347
        %s2351 = sand.u32 %s178, 1
        %s2352 = scalar_lea.sflag [#allocation5], %s2351
        %s2353 = sand.u32 %s178, 1
        %s2354 = smul.addr %s2353, 16
        %s2355 = scalar_lea.vmem [#allocation11], %s2354
        // Predicated region
        $region65: #{tpu_custom_call.1} parent=43 // pred_check
          %p2356 = pneg %p188
        $region66: #{tpu_custom_call.1} parent=43 // pred_check_branch
          %2358 = sbr.rel (%p2356) target = $region68
        $region67: #{tpu_custom_call.1} parent=43 // pred_region
          %s2359 = smul.u32 2, %s29
          %2361 = vsyncadd %s2352, 0
          %s2362 = sadd.s32 %s30, %s2359
          %s2363 = smul.addr %s2362, 8
          %s2364 = scalar_lea.hbm %s6, %s2363
          %s2365 = sshll.u32 %s2355, 4
          %s2366 = int_to_ptr.vmem [resolvable:$true] %s2365
          %s2367 = sshll.u32 %s2364, 4
          %s2368 = int_to_ptr.hbm [resolvable:$true] %s2367
          %2373 = dma.vmem_to_hbm [thread:$0]  %s2366, 256, %s2368, %s2352, 128, 128, 8
        $region68: #{tpu_custom_call.1} parent=43 // pred_fallthru
          _
      $region44: #{tpu_custom_call.1} parent=5 // pred_fallthru
        _
      %p2374 = scmp.le.s32.totalorder 2, %s20
      // Predicated region
      $region69: #{tpu_custom_call.1} parent=5 // pred_check
        %p2375 = pneg %p2374
      $region70: #{tpu_custom_call.1} parent=5 // pred_check_branch
        %2377 = sbr.rel (%p2375) target = $region72
      $region71: #{tpu_custom_call.1} parent=5 // pred_region
        %s2378 = ssub.s32 %s20, 2
        // Predicated region
        $region73: #{tpu_custom_call.1} parent=71 // pred_check
          %p2379 = pneg %p194
        $region74: #{tpu_custom_call.1} parent=71 // pred_check_branch
          %2381 = sbr.rel (%p2379) target = $region76
        $region75: #{tpu_custom_call.1} parent=71 // pred_region
          %s2382 = sand.u32 %s179, 1
          %s2383 = scalar_lea.sflag [#allocation5], %s2382
          %s2384 = sand.u32 %s179, 1
          %s2385 = smul.addr %s2384, 16
          %s2386 = scalar_lea.vmem [#allocation11], %s2385
          %2388 = dma.done %s2383, 256
        $region76: #{tpu_custom_call.1} parent=71 // pred_fallthru
          _
      $region72: #{tpu_custom_call.1} parent=5 // pred_fallthru
        _
    $region6: #{tpu_custom_call.1} parent=1 // loop_footer
      %s24 = sadd.s32 1, %s20
    $region7: #{tpu_custom_call.1} parent=1 // loop_footer_branch
      %19 = sbr.rel target = $region3
    $region8: #{tpu_custom_call.1} parent=1 // loop_exit
      _
    %2389 = vsyncpa [#allocation4], 1
    %s2390 = scalar_lea.sflag [#allocation4], 1
    %2391 = vsyncpa %s2390, 1
    %2392 = vsyncpa [#allocation7], 1
    %2393 = vsyncpa [#allocation10], 1
    %2394 = vsyncpa [#allocation5], 1
    %s2395 = scalar_lea.sflag [#allocation5], 1
    %2396 = vsyncpa %s2395, 1

</llo_original>
